<compile_context>
chip_gen: v5e
topology: v5e:2x2
jax: 0.10.0
libtpu: 0.0.40
codegen_flags: <defaults>
</compile_context>

<pallas_src>
import jax
import jax.numpy as jnp
from jax.experimental import pallas as pl
from jax.experimental.pallas import tpu as pltpu

IN_FEATURES = 28 * 28      # 784 (torch.nn.Flatten of (1, 28, 28))
HIDDEN = 512
OUT_FEATURES = 10
OUT_PADDED = 128           # lane-dense output width; sliced back to 10 in wrapper

_TILE_CANDIDATES = (2048, 1024, 512, 256, 128, 64, 32, 16, 8)
_STEP_OVERHEAD_ROWS = 192  # ~0.35 us per grid step expressed in "row equivalents"


def _round_up(n, m):
    return ((n + m - 1) // m) * m


def _device_kind():
    try:
        return jax.devices()[0].device_kind.lower()
    except Exception:
        return ""


def prepare_params(params):
    """One-time constant preparation (hoisted out of the forward pass).

    params: dict with w1 (784,512), b1 (1,512), w2 (512,512), b2 (1,512),
            w3 (512,10), b3 (1,10), all float32, stored (in_features, out_features).
    """
    w3 = jnp.zeros((HIDDEN, OUT_PADDED), jnp.bfloat16)
    w3 = w3.at[:, :OUT_FEATURES].set(params["w3"].astype(jnp.bfloat16))
    b3 = jnp.zeros((1, OUT_PADDED), jnp.float32)
    b3 = b3.at[:, :OUT_FEATURES].set(
        params["b3"].astype(jnp.float32).reshape(1, OUT_FEATURES))
    return {
        "w1": params["w1"].astype(jnp.bfloat16),                       # (784, 512)
        "b1": params["b1"].astype(jnp.float32).reshape(1, HIDDEN),
        "w2": params["w2"].astype(jnp.bfloat16),                       # (512, 512)
        "b2": params["b2"].astype(jnp.float32).reshape(1, HIDDEN),
        "w3": w3,                                                      # (512, 128)
        "b3": b3,                                                      # (1, 128)
    }


def _pick_batch_tile(B, min_grid, max_tile):
    """Pick a batch tile: prefer grid >= min_grid, then minimize
    padded rows + per-step overhead, then prefer the larger tile."""
    best_key, best_tb = None, None
    for tb in _TILE_CANDIDATES:
        if tb > max_tile:
            continue
        b_pad = _round_up(B, tb)
        grid = b_pad // tb
        cost = b_pad + _STEP_OVERHEAD_ROWS * grid
        key = (grid < min_grid, cost, -tb)
        if best_key is None or key < best_key:
            best_key, best_tb = key, tb
    if best_tb is None:
        best_tb = _round_up(B, 8)
    # If the whole batch fits in one tile anyway, use the tightest 8-aligned tile.
    if _round_up(B, best_tb) // best_tb == 1:
        best_tb = _round_up(B, 8)
    return best_tb


def neural_network_forward(x_nchw, prepared, *, batch_tile=None):
    """Forward pass of the MLP.

    x_nchw:   (B, 1, 28, 28) float32
    prepared: output of prepare_params()
    returns:  (B, 10) float32 logits
    """
    B = x_nchw.shape[0]
    x_flat = x_nchw.reshape(B, -1)            # Flatten (glue, plain JAX)
    assert x_flat.shape[1] == IN_FEATURES

    kind = _device_kind()
    is_v7 = "v7" in kind
    is_v6 = "v6" in kind

    # v6e: wrapper-side bf16 cast (single fused convert) keeps the per-step
    #      x DMA below MXU time. v5e / v7x: DMA f32, cast inside the kernel
    #      (removes a whole XLA convert kernel + an HBM round trip of x).
    if is_v6:
        x_flat = x_flat.astype(jnp.bfloat16)
    else:
        x_flat = x_flat.astype(jnp.float32)

    min_grid = 4 if is_v7 else 2              # v7x: 2 TCs, want >= 2 steps/TC
    max_tile = 1024 if is_v7 else 2048        # v7x has 64 MiB VMEM
    tb = batch_tile if batch_tile is not None else _pick_batch_tile(B, min_grid, max_tile)
    assert tb % 8 == 0, "batch tile must be a multiple of 8 (sublane)"
    B_pad = _round_up(B, tb)
    if B_pad != B:
        # Padded rows produce bias-only logits; sliced off below.
        x_flat = jnp.pad(x_flat, ((0, B_pad - B), (0, 0)))

    # Sub-tile the batch tile so sub-tile B's matmuls overlap sub-tile A's
    # bias/ReLU/cast epilogue on the VPU (MXU otherwise idles on the chain).
    n_sub = 2 if (tb >= 256 and (tb // 2) % 8 == 0) else 1
    sub = tb // n_sub

    def mlp_kernel(x_ref, w1_ref, b1_ref, w2_ref, b2_ref, w3_ref, b3_ref, o_ref):
        w1 = w1_ref[...]
        b1 = b1_ref[...]
        w2 = w2_ref[...]
        b2 = b2_ref[...]
        w3 = w3_ref[...]
        b3 = b3_ref[...]
        for i in range(n_sub):                      # static unroll (2 sub-tiles max)
            r0 = i * sub
            x = x_ref[pl.ds(r0, sub), :].astype(jnp.bfloat16)   # no-op if already bf16
            h1 = jnp.dot(x, w1, preferred_element_type=jnp.float32)
            h1 = jnp.maximum(h1 + b1, 0.0)
            h2 = jnp.dot(h1.astype(jnp.bfloat16), w2,
                         preferred_element_type=jnp.float32)
            h2 = jnp.maximum(h2 + b2, 0.0)
            logits = jnp.dot(h2.astype(jnp.bfloat16), w3,
                             preferred_element_type=jnp.float32)
            o_ref[pl.ds(r0, sub), :] = (logits + b3).astype(o_ref.dtype)

    rep = lambda shape: pl.BlockSpec(shape, lambda i: (0, 0))   # weights replicated
    grid = (B_pad // tb,)

    flops = 2 * B_pad * (IN_FEATURES * HIDDEN + HIDDEN * HIDDEN + HIDDEN * OUT_PADDED)
    bytes_accessed = (
        x_flat.size * x_flat.dtype.itemsize
        + (prepared["w1"].size + prepared["w2"].size + prepared["w3"].size) * 2
        + (prepared["b1"].size + prepared["b2"].size + prepared["b3"].size) * 4
        + B_pad * OUT_PADDED * 4
    )

    out = pl.pallas_call(
        mlp_kernel,
        out_shape=jax.ShapeDtypeStruct((B_pad, OUT_PADDED), jnp.float32),
        grid_spec=pltpu.PrefetchScalarGridSpec(
            num_scalar_prefetch=0,
            grid=grid,
            in_specs=[
                pl.BlockSpec((tb, IN_FEATURES), lambda i: (i, 0)),  # x tile (784 = full dim)
                rep((IN_FEATURES, HIDDEN)),                          # w1 (784, 512)
                rep((1, HIDDEN)),                                    # b1
                rep((HIDDEN, HIDDEN)),                               # w2
                rep((1, HIDDEN)),                                    # b2
                rep((HIDDEN, OUT_PADDED)),                           # w3 (padded to 128)
                rep((1, OUT_PADDED)),                                # b3 (padded to 128)
            ],
            out_specs=pl.BlockSpec((tb, OUT_PADDED), lambda i: (i, 0)),
        ),
        compiler_params=pltpu.CompilerParams(
            dimension_semantics=("parallel",),
            vmem_limit_bytes=48 * 1024 * 1024,
        ),
        cost_estimate=pl.CostEstimate(
            flops=flops, transcendentals=0, bytes_accessed=bytes_accessed),
    )(x_flat, prepared["w1"], prepared["b1"], prepared["w2"], prepared["b2"],
      prepared["w3"], prepared["b3"])

    return out[:B, :OUT_FEATURES]


def init_params(key):
    """Deterministic init mimicking nn.Linear's U(-1/sqrt(fan_in), 1/sqrt(fan_in))."""
    k1, k2, k3, k4, k5, k6 = jax.random.split(key, 6)

    def uniform(k, shape, fan_in):
        bound = 1.0 / jnp.sqrt(fan_in)
        return jax.random.uniform(k, shape, jnp.float32, -bound, bound)

    return {
        "w1": uniform(k1, (IN_FEATURES, HIDDEN), IN_FEATURES),
        "b1": uniform(k2, (1, HIDDEN), IN_FEATURES),
        "w2": uniform(k3, (HIDDEN, HIDDEN), HIDDEN),
        "b2": uniform(k4, (1, HIDDEN), HIDDEN),
        "w3": uniform(k5, (HIDDEN, OUT_FEATURES), HIDDEN),
        "b3": uniform(k6, (1, OUT_FEATURES), HIDDEN),
    }


if __name__ == "__main__":
    key = jax.random.PRNGKey(0)
    k_params, k_x = jax.random.split(key)

    raw_params = init_params(k_params)
    prepared = prepare_params(raw_params)          # one-time constant prep

    B = 8
    x = jax.random.uniform(k_x, (B, 1, 28, 28), jnp.float32)   # NCHW input

    logits = neural_network_forward(x, prepared)
    logits = jax.block_until_ready(logits)
    assert logits.shape == (B, OUT_FEATURES), logits.shape

    # Reference at the same precision (bf16 matmuls, f32 accumulation/bias).
    xb = x.reshape(B, -1).astype(jnp.bfloat16)
    w1b = raw_params["w1"].astype(jnp.bfloat16)
    w2b = raw_params["w2"].astype(jnp.bfloat16)
    w3b = raw_params["w3"].astype(jnp.bfloat16)
    h1 = jnp.maximum(jnp.dot(xb, w1b, preferred_element_type=jnp.float32)
                     + raw_params["b1"], 0.0)
    h2 = jnp.maximum(jnp.dot(h1.astype(jnp.bfloat16), w2b,
                             preferred_element_type=jnp.float32) + raw_params["b2"], 0.0)
    ref = jnp.dot(h2.astype(jnp.bfloat16), w3b,
                  preferred_element_type=jnp.float32) + raw_params["b3"]
    assert jnp.allclose(logits, ref, atol=1e-2, rtol=1e-2), (
        float(jnp.max(jnp.abs(logits - ref))))

    print("KERNEL_OK")
</pallas_src>

<mosaic_0001>
module attributes {stable_mosaic.version = 11 : i64} {
  func.func @mlp_kernel(%arg0: i32, %arg1: memref<8x784xf32, #tpu.memory_space<vmem>>, %arg2: memref<784x512xbf16, #tpu.memory_space<vmem>>, %arg3: memref<1x512xf32, #tpu.memory_space<vmem>>, %arg4: memref<512x512xbf16, #tpu.memory_space<vmem>>, %arg5: memref<1x512xf32, #tpu.memory_space<vmem>>, %arg6: memref<512x128xbf16, #tpu.memory_space<vmem>>, %arg7: memref<1x128xf32, #tpu.memory_space<vmem>>, %arg8: memref<8x128xf32, #tpu.memory_space<vmem>>) attributes {dimension_semantics = [#tpu.dimension_semantics<parallel>], iteration_bounds = array<i64: 1>, scalar_prefetch = 0 : i64, scratch_operands = 0 : i64, tpu.core_type = #tpu.core_type<tc>, window_params = [{transform_indices = @transform_0, window_bounds = array<i64: 8, 784>}, {pipeline_mode = #tpu.pipeline_mode<synchronous>, transform_indices = @transform_1, window_bounds = array<i64: 784, 512>}, {pipeline_mode = #tpu.pipeline_mode<synchronous>, transform_indices = @transform_2, window_bounds = array<i64: 1, 512>}, {pipeline_mode = #tpu.pipeline_mode<synchronous>, transform_indices = @transform_3, window_bounds = array<i64: 512, 512>}, {pipeline_mode = #tpu.pipeline_mode<synchronous>, transform_indices = @transform_4, window_bounds = array<i64: 1, 512>}, {pipeline_mode = #tpu.pipeline_mode<synchronous>, transform_indices = @transform_5, window_bounds = array<i64: 512, 128>}, {pipeline_mode = #tpu.pipeline_mode<synchronous>, transform_indices = @transform_6, window_bounds = array<i64: 1, 128>}, {transform_indices = @transform_7, window_bounds = array<i64: 8, 128>}]} {
    %c0 = arith.constant 0 : index
    %c0_0 = arith.constant 0 : index
    %0 = vector.load %arg2[%c0, %c0_0] : memref<784x512xbf16, #tpu.memory_space<vmem>>, vector<784x512xbf16>
    %c0_1 = arith.constant 0 : index
    %c0_2 = arith.constant 0 : index
    %1 = vector.load %arg3[%c0_1, %c0_2] : memref<1x512xf32, #tpu.memory_space<vmem>>, vector<1x512xf32>
    %c0_3 = arith.constant 0 : index
    %c0_4 = arith.constant 0 : index
    %2 = vector.load %arg4[%c0_3, %c0_4] : memref<512x512xbf16, #tpu.memory_space<vmem>>, vector<512x512xbf16>
    %c0_5 = arith.constant 0 : index
    %c0_6 = arith.constant 0 : index
    %3 = vector.load %arg5[%c0_5, %c0_6] : memref<1x512xf32, #tpu.memory_space<vmem>>, vector<1x512xf32>
    %c0_7 = arith.constant 0 : index
    %c0_8 = arith.constant 0 : index
    %4 = vector.load %arg6[%c0_7, %c0_8] : memref<512x128xbf16, #tpu.memory_space<vmem>>, vector<512x128xbf16>
    %c0_9 = arith.constant 0 : index
    %c0_10 = arith.constant 0 : index
    %5 = vector.load %arg7[%c0_9, %c0_10] : memref<1x128xf32, #tpu.memory_space<vmem>>, vector<1x128xf32>
    %c0_11 = arith.constant 0 : index
    %c0_12 = arith.constant 0 : index
    %6 = vector.load %arg1[%c0_11, %c0_12] : memref<8x784xf32, #tpu.memory_space<vmem>>, vector<8x784xf32>
    %7 = arith.truncf %6 : vector<8x784xf32> to vector<8x784xbf16>
    %cst = arith.constant dense<0.000000e+00> : vector<8x512xf32>
    %8 = tpu.matmul %7, %0, %cst {dimension_numbers = #tpu.dot_dimension_numbers<[1], [0], [0], [1], [0, 0, 1, 1], [], []>} : vector<8x784xbf16>, vector<784x512xbf16>, vector<8x512xf32> -> vector<8x512xf32>
    %9 = vector.broadcast %1 : vector<1x512xf32> to vector<8x512xf32>
    %10 = arith.addf %8, %9 : vector<8x512xf32>
    %cst_13 = arith.constant 0.000000e+00 : f32
    %11 = vector.broadcast %cst_13 : f32 to vector<8x512xf32>
    %12 = arith.maximumf %10, %11 : vector<8x512xf32>
    %13 = arith.truncf %12 : vector<8x512xf32> to vector<8x512xbf16>
    %cst_14 = arith.constant dense<0.000000e+00> : vector<8x512xf32>
    %14 = tpu.matmul %13, %2, %cst_14 {dimension_numbers = #tpu.dot_dimension_numbers<[1], [0], [0], [1], [0, 0, 1, 1], [], []>} : vector<8x512xbf16>, vector<512x512xbf16>, vector<8x512xf32> -> vector<8x512xf32>
    %15 = vector.broadcast %3 : vector<1x512xf32> to vector<8x512xf32>
    %16 = arith.addf %14, %15 : vector<8x512xf32>
    %cst_15 = arith.constant 0.000000e+00 : f32
    %17 = vector.broadcast %cst_15 : f32 to vector<8x512xf32>
    %18 = arith.maximumf %16, %17 : vector<8x512xf32>
    %19 = arith.truncf %18 : vector<8x512xf32> to vector<8x512xbf16>
    %cst_16 = arith.constant dense<0.000000e+00> : vector<8x128xf32>
    %20 = tpu.matmul %19, %4, %cst_16 {dimension_numbers = #tpu.dot_dimension_numbers<[1], [0], [0], [1], [0, 0, 1, 1], [], []>} : vector<8x512xbf16>, vector<512x128xbf16>, vector<8x128xf32> -> vector<8x128xf32>
    %21 = vector.broadcast %5 : vector<1x128xf32> to vector<8x128xf32>
    %22 = arith.addf %20, %21 : vector<8x128xf32>
    %c0_17 = arith.constant 0 : index
    %c0_18 = arith.constant 0 : index
    %23 = vector.load %arg8[%c0_17, %c0_18] : memref<8x128xf32, #tpu.memory_space<vmem>>, vector<8x128xf32>
    tpu.vector_store %arg8[%c0_17, %c0_18], %22 {strides = array<i32>} : memref<8x128xf32, #tpu.memory_space<vmem>>, vector<8x128xf32>,
    return
  }
  func.func @transform_0(%arg0: i32) -> (i32, i32) {
    %c0_i32 = arith.constant 0 : i32
    %c0_i32_0 = arith.constant 0 : i32
    return %arg0, %c0_i32 : i32, i32
  }
  func.func @transform_1(%arg0: i32) -> (i32, i32) {
    %c0_i32 = arith.constant 0 : i32
    %c0_i32_0 = arith.constant 0 : i32
    %c0_i32_1 = arith.constant 0 : i32
    return %c0_i32, %c0_i32_0 : i32, i32
  }
  func.func @transform_2(%arg0: i32) -> (i32, i32) {
    %c0_i32 = arith.constant 0 : i32
    %c0_i32_0 = arith.constant 0 : i32
    %c0_i32_1 = arith.constant 0 : i32
    return %c0_i32, %c0_i32_0 : i32, i32
  }
  func.func @transform_3(%arg0: i32) -> (i32, i32) {
    %c0_i32 = arith.constant 0 : i32
    %c0_i32_0 = arith.constant 0 : i32
    %c0_i32_1 = arith.constant 0 : i32
    return %c0_i32, %c0_i32_0 : i32, i32
  }
  func.func @transform_4(%arg0: i32) -> (i32, i32) {
    %c0_i32 = arith.constant 0 : i32
    %c0_i32_0 = arith.constant 0 : i32
    %c0_i32_1 = arith.constant 0 : i32
    return %c0_i32, %c0_i32_0 : i32, i32
  }
  func.func @transform_5(%arg0: i32) -> (i32, i32) {
    %c0_i32 = arith.constant 0 : i32
    %c0_i32_0 = arith.constant 0 : i32
    %c0_i32_1 = arith.constant 0 : i32
    return %c0_i32, %c0_i32_0 : i32, i32
  }
  func.func @transform_6(%arg0: i32) -> (i32, i32) {
    %c0_i32 = arith.constant 0 : i32
    %c0_i32_0 = arith.constant 0 : i32
    %c0_i32_1 = arith.constant 0 : i32
    return %c0_i32, %c0_i32_0 : i32, i32
  }
  func.func @transform_7(%arg0: i32) -> (i32, i32) {
    %c0_i32 = arith.constant 0 : i32
    %c0_i32_0 = arith.constant 0 : i32
    return %arg0, %c0_i32 : i32, i32
  }
}

</mosaic_0001>

<llo_original>
// kernel: tpu_custom_call.1
$region0: #{tpu_custom_call.1}
  #allocation0 [shape = 'u32[]', space=smem, size = 0x4, offset = 0x4, fixed_abs, tag = 'smem constant byte address 0x4 - core index']
  #allocation1 [shape = 'u32[72,128]{1,0:T(1,128)}', space=vmem, size = 0x9000, scoped, tag = 'internal scratch']
  %s0 = inlined_call_operand.hbm [shape: f32[8,784], index: 0, kind: input, shape index: {}]
  %s1 = inlined_call_operand.hbm [shape: bf16[784,512], index: 1, kind: input, shape index: {}]
  %s2 = inlined_call_operand.hbm [shape: f32[1,512], index: 2, kind: input, shape index: {}]
  %s3 = inlined_call_operand.hbm [shape: bf16[512,512], index: 3, kind: input, shape index: {}]
  %s4 = inlined_call_operand.hbm [shape: f32[1,512], index: 4, kind: input, shape index: {}]
  %s5 = inlined_call_operand.hbm [shape: bf16[512,128], index: 5, kind: input, shape index: {}]
  %s6 = inlined_call_operand.vmem [shape: f32[1,128], index: 6, kind: input, shape index: {}]
  %s7 = inlined_call_operand.hbm [shape: f32[8,128], index: 7, kind: output, shape index: {}]
  %s8 = sld [smem:[#allocation0]]
  $region62: #{tpu_custom_call.1} parent=0
    _
  %s10 = ssub.s32 1, %s8
  %s11 = scalar_select 0, %s10, %s8
  $region1: #{tpu_custom_call.1} parent=0
    #allocation2 [shape = 'u8[28672]{0}', space=vmem, size = 0x7000, scoped, tag = 'input window, operand 0, single buffered']
    #allocation3 [shape = 's32[1]{0}', space=sflag, size = 0x4, scoped, tag = 'scoped memory for tpu_custom_call.1']
    #allocation4 [shape = 's32[1]{0}', space=sflag, size = 0x4, scoped, tag = 'scoped memory for tpu_custom_call.1']
    #allocation5 [shape = 'u8[802816]{0}', space=vmem, size = 0xc4000, scoped, tag = 'input window, operand 1, single buffered']
    #allocation6 [shape = 's32[1]{0}', space=sflag, size = 0x4, scoped, tag = 'scoped memory for tpu_custom_call.1']
    #allocation7 [shape = 'u8[2048]{0}', space=vmem, size = 0x800, scoped, tag = 'input window, operand 2, single buffered']
    #allocation8 [shape = 'u8[524288]{0}', space=vmem, size = 0x80000, scoped, tag = 'input window, operand 3, single buffered']
    #allocation9 [shape = 's32[1]{0}', space=sflag, size = 0x4, scoped, tag = 'scoped memory for tpu_custom_call.1']
    #allocation10 [shape = 'u8[2048]{0}', space=vmem, size = 0x800, scoped, tag = 'input window, operand 4, single buffered']
    #allocation11 [shape = 'u8[131072]{0}', space=vmem, size = 0x20000, scoped, tag = 'input window, operand 5, single buffered']
    #allocation12 [shape = 's32[1]{0}', space=sflag, size = 0x4, scoped, tag = 'scoped memory for tpu_custom_call.1']
    #allocation13 [shape = 'u8[4096]{0}', space=vmem, size = 0x1000, scoped, tag = 'output window, operand 0, single buffered']
    %12 = vsyncpa [#allocation3], 0
    %13 = vsyncpa [#allocation6], 0
    %14 = vsyncpa [#allocation9], 0
    %15 = vsyncpa [#allocation12], 0
    %16 = vsyncpa [#allocation4], 0
    // Predicated region
    $region2: #{tpu_custom_call.1} parent=1 // pred_check
      _
    $region3: #{tpu_custom_call.1} parent=1 // pred_check_branch
      %18 = sbr.rel (0) target = $region5
    $region4: #{tpu_custom_call.1} parent=1 // pred_region
      %20 = vsyncadd [#allocation3], 0
      %s22 = sshll.u32 %s0, 4
      %s23 = int_to_ptr.hbm [resolvable:$true] %s22
      %s24 = sshll.u32 [#allocation2], 4
      %s25 = int_to_ptr.vmem [resolvable:$true] %s24
      %27 = dma.hbm_to_vmem [thread:$0]  %s23, 896, %s25, [#allocation3]
    $region5: #{tpu_custom_call.1} parent=1 // pred_fallthru
      _
    // Predicated region
    $region6: #{tpu_custom_call.1} parent=1 // pred_check
      _
    $region7: #{tpu_custom_call.1} parent=1 // pred_check_branch
      %29 = sbr.rel (0) target = $region9
    $region8: #{tpu_custom_call.1} parent=1 // pred_region
      %31 = vsyncadd [#allocation6], 0
      %s32 = sshll.u32 %s1, 4
      %s33 = int_to_ptr.hbm [resolvable:$true] %s32
      %s34 = sshll.u32 [#allocation5], 4
      %s35 = int_to_ptr.vmem [resolvable:$true] %s34
      %40 = dma.hbm_to_vmem [thread:$0]  %s33, 25088, %s35, [#allocation6], 256, 256, 16
    $region9: #{tpu_custom_call.1} parent=1 // pred_fallthru
      _
    // Predicated region
    $region10: #{tpu_custom_call.1} parent=1 // pred_check
      _
    $region11: #{tpu_custom_call.1} parent=1 // pred_check_branch
      %42 = sbr.rel (0) target = $region13
    $region12: #{tpu_custom_call.1} parent=1 // pred_region
      %44 = vsyncadd [#allocation6], 0
      %s46 = sshll.u32 %s2, 4
      %s47 = int_to_ptr.hbm [resolvable:$true] %s46
      %s48 = sshll.u32 [#allocation7], 4
      %s49 = int_to_ptr.vmem [resolvable:$true] %s48
      %51 = dma.hbm_to_vmem [thread:$0]  %s47, 64, %s49, [#allocation6]
    $region13: #{tpu_custom_call.1} parent=1 // pred_fallthru
      _
    // Predicated region
    $region14: #{tpu_custom_call.1} parent=1 // pred_check
      _
    $region15: #{tpu_custom_call.1} parent=1 // pred_check_branch
      %53 = sbr.rel (0) target = $region17
    $region16: #{tpu_custom_call.1} parent=1 // pred_region
      %55 = vsyncadd [#allocation9], 0
      %s56 = sshll.u32 %s3, 4
      %s57 = int_to_ptr.hbm [resolvable:$true] %s56
      %s58 = sshll.u32 [#allocation8], 4
      %s59 = int_to_ptr.vmem [resolvable:$true] %s58
      %64 = dma.hbm_to_vmem [thread:$0]  %s57, 16384, %s59, [#allocation9], 256, 256, 16
    $region17: #{tpu_custom_call.1} parent=1 // pred_fallthru
      _
    // Predicated region
    $region18: #{tpu_custom_call.1} parent=1 // pred_check
      _
    $region19: #{tpu_custom_call.1} parent=1 // pred_check_branch
      %66 = sbr.rel (0) target = $region21
    $region20: #{tpu_custom_call.1} parent=1 // pred_region
      %68 = vsyncadd [#allocation9], 0
      %s70 = sshll.u32 %s4, 4
      %s71 = int_to_ptr.hbm [resolvable:$true] %s70
      %s72 = sshll.u32 [#allocation10], 4
      %s73 = int_to_ptr.vmem [resolvable:$true] %s72
      %75 = dma.hbm_to_vmem [thread:$0]  %s71, 64, %s73, [#allocation9]
    $region21: #{tpu_custom_call.1} parent=1 // pred_fallthru
      _
    // Predicated region
    $region22: #{tpu_custom_call.1} parent=1 // pred_check
      _
    $region23: #{tpu_custom_call.1} parent=1 // pred_check_branch
      %77 = sbr.rel (0) target = $region25
    $region24: #{tpu_custom_call.1} parent=1 // pred_region
      %79 = vsyncadd [#allocation12], 0
      %s80 = sshll.u32 %s5, 4
      %s81 = int_to_ptr.hbm [resolvable:$true] %s80
      %s82 = sshll.u32 [#allocation11], 4
      %s83 = int_to_ptr.vmem [resolvable:$true] %s82
      %88 = dma.hbm_to_vmem [thread:$0]  %s81, 4096, %s83, [#allocation12], 64, 64, 4
    $region25: #{tpu_custom_call.1} parent=1 // pred_fallthru
      _
    // Predicated region
    $region26: #{tpu_custom_call.1} parent=1 // pred_check
      _
    $region27: #{tpu_custom_call.1} parent=1 // pred_check_branch
      %90 = sbr.rel (0) target = $region29
    $region28: #{tpu_custom_call.1} parent=1 // pred_region
      _
    $region29: #{tpu_custom_call.1} parent=1 // pred_fallthru
      _
    // Predicated region
    $region30: #{tpu_custom_call.1} parent=1 // pred_check
      _
    $region31: #{tpu_custom_call.1} parent=1 // pred_check_branch
      %92 = sbr.rel (0) target = $region33
    $region32: #{tpu_custom_call.1} parent=1 // pred_region
      %94 = dma.done [#allocation3], 896
    $region33: #{tpu_custom_call.1} parent=1 // pred_fallthru
      _
    // Predicated region
    $region34: #{tpu_custom_call.1} parent=1 // pred_check
      _
    $region35: #{tpu_custom_call.1} parent=1 // pred_check_branch
      %96 = sbr.rel (0) target = $region37
    $region36: #{tpu_custom_call.1} parent=1 // pred_region
      %98 = dma.done [#allocation6], 25088
    $region37: #{tpu_custom_call.1} parent=1 // pred_fallthru
      _
    // Predicated region
    $region38: #{tpu_custom_call.1} parent=1 // pred_check
      _
    $region39: #{tpu_custom_call.1} parent=1 // pred_check_branch
      %100 = sbr.rel (0) target = $region41
    $region40: #{tpu_custom_call.1} parent=1 // pred_region
      %102 = dma.done [#allocation6], 64
    $region41: #{tpu_custom_call.1} parent=1 // pred_fallthru
      _
    // Predicated region
    $region42: #{tpu_custom_call.1} parent=1 // pred_check
      _
    $region43: #{tpu_custom_call.1} parent=1 // pred_check_branch
      %104 = sbr.rel (0) target = $region45
    $region44: #{tpu_custom_call.1} parent=1 // pred_region
      %106 = dma.done [#allocation9], 16384
    $region45: #{tpu_custom_call.1} parent=1 // pred_fallthru
      _
    // Predicated region
    $region46: #{tpu_custom_call.1} parent=1 // pred_check
      _
    $region47: #{tpu_custom_call.1} parent=1 // pred_check_branch
      %108 = sbr.rel (0) target = $region49
    $region48: #{tpu_custom_call.1} parent=1 // pred_region
      %110 = dma.done [#allocation9], 64
    $region49: #{tpu_custom_call.1} parent=1 // pred_fallthru
      _
    // Predicated region
    $region50: #{tpu_custom_call.1} parent=1 // pred_check
      _
    $region51: #{tpu_custom_call.1} parent=1 // pred_check_branch
      %112 = sbr.rel (0) target = $region53
    $region52: #{tpu_custom_call.1} parent=1 // pred_region
      %114 = dma.done [#allocation12], 4096
    $region53: #{tpu_custom_call.1} parent=1 // pred_fallthru
      _
    %v116 = vld [vmem:[#allocation5] sm:$0xff]
    %v117 = vld [vmem:[#allocation5 + $0x8] sm:$0xff]
    %v118 = vld [vmem:[#allocation5 + $0x10] sm:$0xff]
    %v119 = vld [vmem:[#allocation5 + $0x18] sm:$0xff]
    %v120 = vld [vmem:[#allocation5 + $0x20] sm:$0xff]
    %v121 = vld [vmem:[#allocation5 + $0x28] sm:$0xff]
    %v122 = vld [vmem:[#allocation5 + $0x30] sm:$0xff]
    %v123 = vld [vmem:[#allocation5 + $0x38] sm:$0xff]
    %v124 = vld [vmem:[#allocation5 + $0x40] sm:$0xff]
    %v125 = vld [vmem:[#allocation5 + $0x48] sm:$0xff]
    %v126 = vld [vmem:[#allocation5 + $0x50] sm:$0xff]
    %v127 = vld [vmem:[#allocation5 + $0x58] sm:$0xff]
    %v128 = vld [vmem:[#allocation5 + $0x60] sm:$0xff]
    %v129 = vld [vmem:[#allocation5 + $0x68] sm:$0xff]
    %v130 = vld [vmem:[#allocation5 + $0x70] sm:$0xff]
    %v131 = vld [vmem:[#allocation5 + $0x78] sm:$0xff]
    %v132 = vld [vmem:[#allocation5 + $0x80] sm:$0xff]
    %v133 = vld [vmem:[#allocation5 + $0x88] sm:$0xff]
    %v134 = vld [vmem:[#allocation5 + $0x90] sm:$0xff]
    %v135 = vld [vmem:[#allocation5 + $0x98] sm:$0xff]
    %v136 = vld [vmem:[#allocation5 + $0xa0] sm:$0xff]
    %v137 = vld [vmem:[#allocation5 + $0xa8] sm:$0xff]
    %v138 = vld [vmem:[#allocation5 + $0xb0] sm:$0xff]
    %v139 = vld [vmem:[#allocation5 + $0xb8] sm:$0xff]
    %v140 = vld [vmem:[#allocation5 + $0xc0] sm:$0xff]
    %v141 = vld [vmem:[#allocation5 + $0xc8] sm:$0xff]
    %v142 = vld [vmem:[#allocation5 + $0xd0] sm:$0xff]
    %v143 = vld [vmem:[#allocation5 + $0xd8] sm:$0xff]
    %v144 = vld [vmem:[#allocation5 + $0xe0] sm:$0xff]
    %v145 = vld [vmem:[#allocation5 + $0xe8] sm:$0xff]
    %v146 = vld [vmem:[#allocation5 + $0xf0] sm:$0xff]
    %v147 = vld [vmem:[#allocation5 + $0xf8] sm:$0xff]
    %v148 = vld [vmem:[#allocation5 + $0x100] sm:$0xff]
    %v149 = vld [vmem:[#allocation5 + $0x108] sm:$0xff]
    %v150 = vld [vmem:[#allocation5 + $0x110] sm:$0xff]
    %v151 = vld [vmem:[#allocation5 + $0x118] sm:$0xff]
    %v152 = vld [vmem:[#allocation5 + $0x120] sm:$0xff]
    %v153 = vld [vmem:[#allocation5 + $0x128] sm:$0xff]
    %v154 = vld [vmem:[#allocation5 + $0x130] sm:$0xff]
    %v155 = vld [vmem:[#allocation5 + $0x138] sm:$0xff]
    %v156 = vld [vmem:[#allocation5 + $0x140] sm:$0xff]
    %v157 = vld [vmem:[#allocation5 + $0x148] sm:$0xff]
    %v158 = vld [vmem:[#allocation5 + $0x150] sm:$0xff]
    %v159 = vld [vmem:[#allocation5 + $0x158] sm:$0xff]
    %v160 = vld [vmem:[#allocation5 + $0x160] sm:$0xff]
    %v161 = vld [vmem:[#allocation5 + $0x168] sm:$0xff]
    %v162 = vld [vmem:[#allocation5 + $0x170] sm:$0xff]
    %v163 = vld [vmem:[#allocation5 + $0x178] sm:$0xff]
    %v164 = vld [vmem:[#allocation5 + $0x180] sm:$0xff]
    %v165 = vld [vmem:[#allocation5 + $0x188] sm:$0xff]
    %v166 = vld [vmem:[#allocation5 + $0x190] sm:$0xff]
    %v167 = vld [vmem:[#allocation5 + $0x198] sm:$0xff]
    %v168 = vld [vmem:[#allocation5 + $0x1a0] sm:$0xff]
    %v169 = vld [vmem:[#allocation5 + $0x1a8] sm:$0xff]
    %v170 = vld [vmem:[#allocation5 + $0x1b0] sm:$0xff]
    %v171 = vld [vmem:[#allocation5 + $0x1b8] sm:$0xff]
    %v172 = vld [vmem:[#allocation5 + $0x1c0] sm:$0xff]
    %v173 = vld [vmem:[#allocation5 + $0x1c8] sm:$0xff]
    %v174 = vld [vmem:[#allocation5 + $0x1d0] sm:$0xff]
    %v175 = vld [vmem:[#allocation5 + $0x1d8] sm:$0xff]
    %v176 = vld [vmem:[#allocation5 + $0x1e0] sm:$0xff]
    %v177 = vld [vmem:[#allocation5 + $0x1e8] sm:$0xff]
    %v178 = vld [vmem:[#allocation5 + $0x1f0] sm:$0xff]
    %v179 = vld [vmem:[#allocation5 + $0x1f8] sm:$0xff]
    %v180 = vld [vmem:[#allocation5 + $0x200] sm:$0xff]
    %v181 = vld [vmem:[#allocation5 + $0x208] sm:$0xff]
    %v182 = vld [vmem:[#allocation5 + $0x210] sm:$0xff]
    %v183 = vld [vmem:[#allocation5 + $0x218] sm:$0xff]
    %v184 = vld [vmem:[#allocation5 + $0x220] sm:$0xff]
    %v185 = vld [vmem:[#allocation5 + $0x228] sm:$0xff]
    %v186 = vld [vmem:[#allocation5 + $0x230] sm:$0xff]
    %v187 = vld [vmem:[#allocation5 + $0x238] sm:$0xff]
    %v188 = vld [vmem:[#allocation5 + $0x240] sm:$0xff]
    %v189 = vld [vmem:[#allocation5 + $0x248] sm:$0xff]
    %v190 = vld [vmem:[#allocation5 + $0x250] sm:$0xff]
    %v191 = vld [vmem:[#allocation5 + $0x258] sm:$0xff]
    %v192 = vld [vmem:[#allocation5 + $0x260] sm:$0xff]
    %v193 = vld [vmem:[#allocation5 + $0x268] sm:$0xff]
    %v194 = vld [vmem:[#allocation5 + $0x270] sm:$0xff]
    %v195 = vld [vmem:[#allocation5 + $0x278] sm:$0xff]
    %v196 = vld [vmem:[#allocation5 + $0x280] sm:$0xff]
    %v197 = vld [vmem:[#allocation5 + $0x288] sm:$0xff]
    %v198 = vld [vmem:[#allocation5 + $0x290] sm:$0xff]
    %v199 = vld [vmem:[#allocation5 + $0x298] sm:$0xff]
    %v200 = vld [vmem:[#allocation5 + $0x2a0] sm:$0xff]
    %v201 = vld [vmem:[#allocation5 + $0x2a8] sm:$0xff]
    %v202 = vld [vmem:[#allocation5 + $0x2b0] sm:$0xff]
    %v203 = vld [vmem:[#allocation5 + $0x2b8] sm:$0xff]
    %v204 = vld [vmem:[#allocation5 + $0x2c0] sm:$0xff]
    %v205 = vld [vmem:[#allocation5 + $0x2c8] sm:$0xff]
    %v206 = vld [vmem:[#allocation5 + $0x2d0] sm:$0xff]
    %v207 = vld [vmem:[#allocation5 + $0x2d8] sm:$0xff]
    %v208 = vld [vmem:[#allocation5 + $0x2e0] sm:$0xff]
    %v209 = vld [vmem:[#allocation5 + $0x2e8] sm:$0xff]
    %v210 = vld [vmem:[#allocation5 + $0x2f0] sm:$0xff]
    %v211 = vld [vmem:[#allocation5 + $0x2f8] sm:$0xff]
    %v212 = vld [vmem:[#allocation5 + $0x300] sm:$0xff]
    %v213 = vld [vmem:[#allocation5 + $0x308] sm:$0xff]
    %v214 = vld [vmem:[#allocation5 + $0x310] sm:$0xff]
    %v215 = vld [vmem:[#allocation5 + $0x318] sm:$0xff]
    %v216 = vld [vmem:[#allocation5 + $0x320] sm:$0xff]
    %v217 = vld [vmem:[#allocation5 + $0x328] sm:$0xff]
    %v218 = vld [vmem:[#allocation5 + $0x330] sm:$0xff]
    %v219 = vld [vmem:[#allocation5 + $0x338] sm:$0xff]
    %v220 = vld [vmem:[#allocation5 + $0x340] sm:$0xff]
    %v221 = vld [vmem:[#allocation5 + $0x348] sm:$0xff]
    %v222 = vld [vmem:[#allocation5 + $0x350] sm:$0xff]
    %v223 = vld [vmem:[#allocation5 + $0x358] sm:$0xff]
    %v224 = vld [vmem:[#allocation5 + $0x360] sm:$0xff]
    %v225 = vld [vmem:[#allocation5 + $0x368] sm:$0xff]
    %v226 = vld [vmem:[#allocation5 + $0x370] sm:$0xff]
    %v227 = vld [vmem:[#allocation5 + $0x378] sm:$0xff]
    %v228 = vld [vmem:[#allocation5 + $0x380] sm:$0xff]
    %v229 = vld [vmem:[#allocation5 + $0x388] sm:$0xff]
    %v230 = vld [vmem:[#allocation5 + $0x390] sm:$0xff]
    %v231 = vld [vmem:[#allocation5 + $0x398] sm:$0xff]
    %v232 = vld [vmem:[#allocation5 + $0x3a0] sm:$0xff]
    %v233 = vld [vmem:[#allocation5 + $0x3a8] sm:$0xff]
    %v234 = vld [vmem:[#allocation5 + $0x3b0] sm:$0xff]
    %v235 = vld [vmem:[#allocation5 + $0x3b8] sm:$0xff]
    %v236 = vld [vmem:[#allocation5 + $0x3c0] sm:$0xff]
    %v237 = vld [vmem:[#allocation5 + $0x3c8] sm:$0xff]
    %v238 = vld [vmem:[#allocation5 + $0x3d0] sm:$0xff]
    %v239 = vld [vmem:[#allocation5 + $0x3d8] sm:$0xff]
    %v240 = vld [vmem:[#allocation5 + $0x3e0] sm:$0xff]
    %v241 = vld [vmem:[#allocation5 + $0x3e8] sm:$0xff]
    %v242 = vld [vmem:[#allocation5 + $0x3f0] sm:$0xff]
    %v243 = vld [vmem:[#allocation5 + $0x3f8] sm:$0xff]
    %v244 = vld [vmem:[#allocation5 + $0x400] sm:$0xff]
    %v245 = vld [vmem:[#allocation5 + $0x408] sm:$0xff]
    %v246 = vld [vmem:[#allocation5 + $0x410] sm:$0xff]
    %v247 = vld [vmem:[#allocation5 + $0x418] sm:$0xff]
    %v248 = vld [vmem:[#allocation5 + $0x420] sm:$0xff]
    %v249 = vld [vmem:[#allocation5 + $0x428] sm:$0xff]
    %v250 = vld [vmem:[#allocation5 + $0x430] sm:$0xff]
    %v251 = vld [vmem:[#allocation5 + $0x438] sm:$0xff]
    %v252 = vld [vmem:[#allocation5 + $0x440] sm:$0xff]
    %v253 = vld [vmem:[#allocation5 + $0x448] sm:$0xff]
    %v254 = vld [vmem:[#allocation5 + $0x450] sm:$0xff]
    %v255 = vld [vmem:[#allocation5 + $0x458] sm:$0xff]
    %v256 = vld [vmem:[#allocation5 + $0x460] sm:$0xff]
    %v257 = vld [vmem:[#allocation5 + $0x468] sm:$0xff]
    %v258 = vld [vmem:[#allocation5 + $0x470] sm:$0xff]
    %v259 = vld [vmem:[#allocation5 + $0x478] sm:$0xff]
    %v260 = vld [vmem:[#allocation5 + $0x480] sm:$0xff]
    %v261 = vld [vmem:[#allocation5 + $0x488] sm:$0xff]
    %v262 = vld [vmem:[#allocation5 + $0x490] sm:$0xff]
    %v263 = vld [vmem:[#allocation5 + $0x498] sm:$0xff]
    %v264 = vld [vmem:[#allocation5 + $0x4a0] sm:$0xff]
    %v265 = vld [vmem:[#allocation5 + $0x4a8] sm:$0xff]
    %v266 = vld [vmem:[#allocation5 + $0x4b0] sm:$0xff]
    %v267 = vld [vmem:[#allocation5 + $0x4b8] sm:$0xff]
    %v268 = vld [vmem:[#allocation5 + $0x4c0] sm:$0xff]
    %v269 = vld [vmem:[#allocation5 + $0x4c8] sm:$0xff]
    %v270 = vld [vmem:[#allocation5 + $0x4d0] sm:$0xff]
    %v271 = vld [vmem:[#allocation5 + $0x4d8] sm:$0xff]
    %v272 = vld [vmem:[#allocation5 + $0x4e0] sm:$0xff]
    %v273 = vld [vmem:[#allocation5 + $0x4e8] sm:$0xff]
    %v274 = vld [vmem:[#allocation5 + $0x4f0] sm:$0xff]
    %v275 = vld [vmem:[#allocation5 + $0x4f8] sm:$0xff]
    %v276 = vld [vmem:[#allocation5 + $0x500] sm:$0xff]
    %v277 = vld [vmem:[#allocation5 + $0x508] sm:$0xff]
    %v278 = vld [vmem:[#allocation5 + $0x510] sm:$0xff]
    %v279 = vld [vmem:[#allocation5 + $0x518] sm:$0xff]
    %v280 = vld [vmem:[#allocation5 + $0x520] sm:$0xff]
    %v281 = vld [vmem:[#allocation5 + $0x528] sm:$0xff]
    %v282 = vld [vmem:[#allocation5 + $0x530] sm:$0xff]
    %v283 = vld [vmem:[#allocation5 + $0x538] sm:$0xff]
    %v284 = vld [vmem:[#allocation5 + $0x540] sm:$0xff]
    %v285 = vld [vmem:[#allocation5 + $0x548] sm:$0xff]
    %v286 = vld [vmem:[#allocation5 + $0x550] sm:$0xff]
    %v287 = vld [vmem:[#allocation5 + $0x558] sm:$0xff]
    %v288 = vld [vmem:[#allocation5 + $0x560] sm:$0xff]
    %v289 = vld [vmem:[#allocation5 + $0x568] sm:$0xff]
    %v290 = vld [vmem:[#allocation5 + $0x570] sm:$0xff]
    %v291 = vld [vmem:[#allocation5 + $0x578] sm:$0xff]
    %v292 = vld [vmem:[#allocation5 + $0x580] sm:$0xff]
    %v293 = vld [vmem:[#allocation5 + $0x588] sm:$0xff]
    %v294 = vld [vmem:[#allocation5 + $0x590] sm:$0xff]
    %v295 = vld [vmem:[#allocation5 + $0x598] sm:$0xff]
    %v296 = vld [vmem:[#allocation5 + $0x5a0] sm:$0xff]
    %v297 = vld [vmem:[#allocation5 + $0x5a8] sm:$0xff]
    %v298 = vld [vmem:[#allocation5 + $0x5b0] sm:$0xff]
    %v299 = vld [vmem:[#allocation5 + $0x5b8] sm:$0xff]
    %v300 = vld [vmem:[#allocation5 + $0x5c0] sm:$0xff]
    %v301 = vld [vmem:[#allocation5 + $0x5c8] sm:$0xff]
    %v302 = vld [vmem:[#allocation5 + $0x5d0] sm:$0xff]
    %v303 = vld [vmem:[#allocation5 + $0x5d8] sm:$0xff]
    %v304 = vld [vmem:[#allocation5 + $0x5e0] sm:$0xff]
    %v305 = vld [vmem:[#allocation5 + $0x5e8] sm:$0xff]
    %v306 = vld [vmem:[#allocation5 + $0x5f0] sm:$0xff]
    %v307 = vld [vmem:[#allocation5 + $0x5f8] sm:$0xff]
    %v308 = vld [vmem:[#allocation5 + $0x600] sm:$0xff]
    %v309 = vld [vmem:[#allocation5 + $0x608] sm:$0xff]
    %v310 = vld [vmem:[#allocation5 + $0x610] sm:$0xff]
    %v311 = vld [vmem:[#allocation5 + $0x618] sm:$0xff]
    %v312 = vld [vmem:[#allocation7] sm:$0xf]
    %v313 = vld [vmem:[#allocation8] sm:$0xff]
    %v314 = vld [vmem:[#allocation8 + $0x8] sm:$0xff]
    %v315 = vld [vmem:[#allocation8 + $0x10] sm:$0xff]
    %v316 = vld [vmem:[#allocation8 + $0x18] sm:$0xff]
    %v317 = vld [vmem:[#allocation8 + $0x20] sm:$0xff]
    %v318 = vld [vmem:[#allocation8 + $0x28] sm:$0xff]
    %v319 = vld [vmem:[#allocation8 + $0x30] sm:$0xff]
    %v320 = vld [vmem:[#allocation8 + $0x38] sm:$0xff]
    %v321 = vld [vmem:[#allocation8 + $0x40] sm:$0xff]
    %v322 = vld [vmem:[#allocation8 + $0x48] sm:$0xff]
    %v323 = vld [vmem:[#allocation8 + $0x50] sm:$0xff]
    %v324 = vld [vmem:[#allocation8 + $0x58] sm:$0xff]
    %v325 = vld [vmem:[#allocation8 + $0x60] sm:$0xff]
    %v326 = vld [vmem:[#allocation8 + $0x68] sm:$0xff]
    %v327 = vld [vmem:[#allocation8 + $0x70] sm:$0xff]
    %v328 = vld [vmem:[#allocation8 + $0x78] sm:$0xff]
    %v329 = vld [vmem:[#allocation8 + $0x80] sm:$0xff]
    %v330 = vld [vmem:[#allocation8 + $0x88] sm:$0xff]
    %v331 = vld [vmem:[#allocation8 + $0x90] sm:$0xff]
    %v332 = vld [vmem:[#allocation8 + $0x98] sm:$0xff]
    %v333 = vld [vmem:[#allocation8 + $0xa0] sm:$0xff]
    %v334 = vld [vmem:[#allocation8 + $0xa8] sm:$0xff]
    %v335 = vld [vmem:[#allocation8 + $0xb0] sm:$0xff]
    %v336 = vld [vmem:[#allocation8 + $0xb8] sm:$0xff]
    %v337 = vld [vmem:[#allocation8 + $0xc0] sm:$0xff]
    %v338 = vld [vmem:[#allocation8 + $0xc8] sm:$0xff]
    %v339 = vld [vmem:[#allocation8 + $0xd0] sm:$0xff]
    %v340 = vld [vmem:[#allocation8 + $0xd8] sm:$0xff]
    %v341 = vld [vmem:[#allocation8 + $0xe0] sm:$0xff]
    %v342 = vld [vmem:[#allocation8 + $0xe8] sm:$0xff]
    %v343 = vld [vmem:[#allocation8 + $0xf0] sm:$0xff]
    %v344 = vld [vmem:[#allocation8 + $0xf8] sm:$0xff]
    %v345 = vld [vmem:[#allocation8 + $0x100] sm:$0xff]
    %v346 = vld [vmem:[#allocation8 + $0x108] sm:$0xff]
    %v347 = vld [vmem:[#allocation8 + $0x110] sm:$0xff]
    %v348 = vld [vmem:[#allocation8 + $0x118] sm:$0xff]
    %v349 = vld [vmem:[#allocation8 + $0x120] sm:$0xff]
    %v350 = vld [vmem:[#allocation8 + $0x128] sm:$0xff]
    %v351 = vld [vmem:[#allocation8 + $0x130] sm:$0xff]
    %v352 = vld [vmem:[#allocation8 + $0x138] sm:$0xff]
    %v353 = vld [vmem:[#allocation8 + $0x140] sm:$0xff]
    %v354 = vld [vmem:[#allocation8 + $0x148] sm:$0xff]
    %v355 = vld [vmem:[#allocation8 + $0x150] sm:$0xff]
    %v356 = vld [vmem:[#allocation8 + $0x158] sm:$0xff]
    %v357 = vld [vmem:[#allocation8 + $0x160] sm:$0xff]
    %v358 = vld [vmem:[#allocation8 + $0x168] sm:$0xff]
    %v359 = vld [vmem:[#allocation8 + $0x170] sm:$0xff]
    %v360 = vld [vmem:[#allocation8 + $0x178] sm:$0xff]
    %v361 = vld [vmem:[#allocation8 + $0x180] sm:$0xff]
    %v362 = vld [vmem:[#allocation8 + $0x188] sm:$0xff]
    %v363 = vld [vmem:[#allocation8 + $0x190] sm:$0xff]
    %v364 = vld [vmem:[#allocation8 + $0x198] sm:$0xff]
    %v365 = vld [vmem:[#allocation8 + $0x1a0] sm:$0xff]
    %v366 = vld [vmem:[#allocation8 + $0x1a8] sm:$0xff]
    %v367 = vld [vmem:[#allocation8 + $0x1b0] sm:$0xff]
    %v368 = vld [vmem:[#allocation8 + $0x1b8] sm:$0xff]
    %v369 = vld [vmem:[#allocation8 + $0x1c0] sm:$0xff]
    %v370 = vld [vmem:[#allocation8 + $0x1c8] sm:$0xff]
    %v371 = vld [vmem:[#allocation8 + $0x1d0] sm:$0xff]
    %v372 = vld [vmem:[#allocation8 + $0x1d8] sm:$0xff]
    %v373 = vld [vmem:[#allocation8 + $0x1e0] sm:$0xff]
    %v374 = vld [vmem:[#allocation8 + $0x1e8] sm:$0xff]
    %v375 = vld [vmem:[#allocation8 + $0x1f0] sm:$0xff]
    %v376 = vld [vmem:[#allocation8 + $0x1f8] sm:$0xff]
    %v377 = vld [vmem:[#allocation8 + $0x200] sm:$0xff]
    %v378 = vld [vmem:[#allocation8 + $0x208] sm:$0xff]
    %v379 = vld [vmem:[#allocation8 + $0x210] sm:$0xff]
    %v380 = vld [vmem:[#allocation8 + $0x218] sm:$0xff]
    %v381 = vld [vmem:[#allocation8 + $0x220] sm:$0xff]
    %v382 = vld [vmem:[#allocation8 + $0x228] sm:$0xff]
    %v383 = vld [vmem:[#allocation8 + $0x230] sm:$0xff]
    %v384 = vld [vmem:[#allocation8 + $0x238] sm:$0xff]
    %v385 = vld [vmem:[#allocation8 + $0x240] sm:$0xff]
    %v386 = vld [vmem:[#allocation8 + $0x248] sm:$0xff]
    %v387 = vld [vmem:[#allocation8 + $0x250] sm:$0xff]
    %v388 = vld [vmem:[#allocation8 + $0x258] sm:$0xff]
    %v389 = vld [vmem:[#allocation8 + $0x260] sm:$0xff]
    %v390 = vld [vmem:[#allocation8 + $0x268] sm:$0xff]
    %v391 = vld [vmem:[#allocation8 + $0x270] sm:$0xff]
    %v392 = vld [vmem:[#allocation8 + $0x278] sm:$0xff]
    %v393 = vld [vmem:[#allocation8 + $0x280] sm:$0xff]
    %v394 = vld [vmem:[#allocation8 + $0x288] sm:$0xff]
    %v395 = vld [vmem:[#allocation8 + $0x290] sm:$0xff]
    %v396 = vld [vmem:[#allocation8 + $0x298] sm:$0xff]
    %v397 = vld [vmem:[#allocation8 + $0x2a0] sm:$0xff]
    %v398 = vld [vmem:[#allocation8 + $0x2a8] sm:$0xff]
    %v399 = vld [vmem:[#allocation8 + $0x2b0] sm:$0xff]
    %v400 = vld [vmem:[#allocation8 + $0x2b8] sm:$0xff]
    %v401 = vld [vmem:[#allocation8 + $0x2c0] sm:$0xff]
    %v402 = vld [vmem:[#allocation8 + $0x2c8] sm:$0xff]
    %v403 = vld [vmem:[#allocation8 + $0x2d0] sm:$0xff]
    %v404 = vld [vmem:[#allocation8 + $0x2d8] sm:$0xff]
    %v405 = vld [vmem:[#allocation8 + $0x2e0] sm:$0xff]
    %v406 = vld [vmem:[#allocation8 + $0x2e8] sm:$0xff]
    %v407 = vld [vmem:[#allocation8 + $0x2f0] sm:$0xff]
    %v408 = vld [vmem:[#allocation8 + $0x2f8] sm:$0xff]
    %v409 = vld [vmem:[#allocation8 + $0x300] sm:$0xff]
    %v410 = vld [vmem:[#allocation8 + $0x308] sm:$0xff]
    %v411 = vld [vmem:[#allocation8 + $0x310] sm:$0xff]
    %v412 = vld [vmem:[#allocation8 + $0x318] sm:$0xff]
    %v413 = vld [vmem:[#allocation8 + $0x320] sm:$0xff]
    %v414 = vld [vmem:[#allocation8 + $0x328] sm:$0xff]
    %v415 = vld [vmem:[#allocation8 + $0x330] sm:$0xff]
    %v416 = vld [vmem:[#allocation8 + $0x338] sm:$0xff]
    %v417 = vld [vmem:[#allocation8 + $0x340] sm:$0xff]
    %v418 = vld [vmem:[#allocation8 + $0x348] sm:$0xff]
    %v419 = vld [vmem:[#allocation8 + $0x350] sm:$0xff]
    %v420 = vld [vmem:[#allocation8 + $0x358] sm:$0xff]
    %v421 = vld [vmem:[#allocation8 + $0x360] sm:$0xff]
    %v422 = vld [vmem:[#allocation8 + $0x368] sm:$0xff]
    %v423 = vld [vmem:[#allocation8 + $0x370] sm:$0xff]
    %v424 = vld [vmem:[#allocation8 + $0x378] sm:$0xff]
    %v425 = vld [vmem:[#allocation8 + $0x380] sm:$0xff]
    %v426 = vld [vmem:[#allocation8 + $0x388] sm:$0xff]
    %v427 = vld [vmem:[#allocation8 + $0x390] sm:$0xff]
    %v428 = vld [vmem:[#allocation8 + $0x398] sm:$0xff]
    %v429 = vld [vmem:[#allocation8 + $0x3a0] sm:$0xff]
    %v430 = vld [vmem:[#allocation8 + $0x3a8] sm:$0xff]
    %v431 = vld [vmem:[#allocation8 + $0x3b0] sm:$0xff]
    %v432 = vld [vmem:[#allocation8 + $0x3b8] sm:$0xff]
    %v433 = vld [vmem:[#allocation8 + $0x3c0] sm:$0xff]
    %v434 = vld [vmem:[#allocation8 + $0x3c8] sm:$0xff]
    %v435 = vld [vmem:[#allocation8 + $0x3d0] sm:$0xff]
    %v436 = vld [vmem:[#allocation8 + $0x3d8] sm:$0xff]
    %v437 = vld [vmem:[#allocation8 + $0x3e0] sm:$0xff]
    %v438 = vld [vmem:[#allocation8 + $0x3e8] sm:$0xff]
    %v439 = vld [vmem:[#allocation8 + $0x3f0] sm:$0xff]
    %v440 = vld [vmem:[#allocation8 + $0x3f8] sm:$0xff]
    %v441 = vld [vmem:[#allocation10] sm:$0xf]
    %v442 = vld [vmem:[#allocation11] sm:$0xf]
    %v443 = vld [vmem:[#allocation11 + $0x4] sm:$0xf]
    %v444 = vld [vmem:[#allocation11 + $0x8] sm:$0xf]
    %v445 = vld [vmem:[#allocation11 + $0xc] sm:$0xf]
    %v446 = vld [vmem:[#allocation11 + $0x10] sm:$0xf]
    %v447 = vld [vmem:[#allocation11 + $0x14] sm:$0xf]
    %v448 = vld [vmem:[#allocation11 + $0x18] sm:$0xf]
    %v449 = vld [vmem:[#allocation11 + $0x1c] sm:$0xf]
    %v450 = vld [vmem:[#allocation11 + $0x20] sm:$0xf]
    %v451 = vld [vmem:[#allocation11 + $0x24] sm:$0xf]
    %v452 = vld [vmem:[#allocation11 + $0x28] sm:$0xf]
    %v453 = vld [vmem:[#allocation11 + $0x2c] sm:$0xf]
    %v454 = vld [vmem:[#allocation11 + $0x30] sm:$0xf]
    %v455 = vld [vmem:[#allocation11 + $0x34] sm:$0xf]
    %v456 = vld [vmem:[#allocation11 + $0x38] sm:$0xf]
    %v457 = vld [vmem:[#allocation11 + $0x3c] sm:$0xf]
    %v458 = vld [vmem:[#allocation11 + $0x40] sm:$0xf]
    %v459 = vld [vmem:[#allocation11 + $0x44] sm:$0xf]
    %v460 = vld [vmem:[#allocation11 + $0x48] sm:$0xf]
    %v461 = vld [vmem:[#allocation11 + $0x4c] sm:$0xf]
    %v462 = vld [vmem:[#allocation11 + $0x50] sm:$0xf]
    %v463 = vld [vmem:[#allocation11 + $0x54] sm:$0xf]
    %v464 = vld [vmem:[#allocation11 + $0x58] sm:$0xf]
    %v465 = vld [vmem:[#allocation11 + $0x5c] sm:$0xf]
    %v466 = vld [vmem:[#allocation11 + $0x60] sm:$0xf]
    %v467 = vld [vmem:[#allocation11 + $0x64] sm:$0xf]
    %v468 = vld [vmem:[#allocation11 + $0x68] sm:$0xf]
    %v469 = vld [vmem:[#allocation11 + $0x6c] sm:$0xf]
    %v470 = vld [vmem:[#allocation11 + $0x70] sm:$0xf]
    %v471 = vld [vmem:[#allocation11 + $0x74] sm:$0xf]
    %v472 = vld [vmem:[#allocation11 + $0x78] sm:$0xf]
    %v473 = vld [vmem:[#allocation11 + $0x7c] sm:$0xf]
    %v474 = vld [vmem:[#allocation11 + $0x80] sm:$0xf]
    %v475 = vld [vmem:[#allocation11 + $0x84] sm:$0xf]
    %v476 = vld [vmem:[#allocation11 + $0x88] sm:$0xf]
    %v477 = vld [vmem:[#allocation11 + $0x8c] sm:$0xf]
    %v478 = vld [vmem:[#allocation11 + $0x90] sm:$0xf]
    %v479 = vld [vmem:[#allocation11 + $0x94] sm:$0xf]
    %v480 = vld [vmem:[#allocation11 + $0x98] sm:$0xf]
    %v481 = vld [vmem:[#allocation11 + $0x9c] sm:$0xf]
    %v482 = vld [vmem:[#allocation11 + $0xa0] sm:$0xf]
    %v483 = vld [vmem:[#allocation11 + $0xa4] sm:$0xf]
    %v484 = vld [vmem:[#allocation11 + $0xa8] sm:$0xf]
    %v485 = vld [vmem:[#allocation11 + $0xac] sm:$0xf]
    %v486 = vld [vmem:[#allocation11 + $0xb0] sm:$0xf]
    %v487 = vld [vmem:[#allocation11 + $0xb4] sm:$0xf]
    %v488 = vld [vmem:[#allocation11 + $0xb8] sm:$0xf]
    %v489 = vld [vmem:[#allocation11 + $0xbc] sm:$0xf]
    %v490 = vld [vmem:[#allocation11 + $0xc0] sm:$0xf]
    %v491 = vld [vmem:[#allocation11 + $0xc4] sm:$0xf]
    %v492 = vld [vmem:[#allocation11 + $0xc8] sm:$0xf]
    %v493 = vld [vmem:[#allocation11 + $0xcc] sm:$0xf]
    %v494 = vld [vmem:[#allocation11 + $0xd0] sm:$0xf]
    %v495 = vld [vmem:[#allocation11 + $0xd4] sm:$0xf]
    %v496 = vld [vmem:[#allocation11 + $0xd8] sm:$0xf]
    %v497 = vld [vmem:[#allocation11 + $0xdc] sm:$0xf]
    %v498 = vld [vmem:[#allocation11 + $0xe0] sm:$0xf]
    %v499 = vld [vmem:[#allocation11 + $0xe4] sm:$0xf]
    %v500 = vld [vmem:[#allocation11 + $0xe8] sm:$0xf]
    %v501 = vld [vmem:[#allocation11 + $0xec] sm:$0xf]
    %v502 = vld [vmem:[#allocation11 + $0xf0] sm:$0xf]
    %v503 = vld [vmem:[#allocation11 + $0xf4] sm:$0xf]
    %v504 = vld [vmem:[#allocation11 + $0xf8] sm:$0xf]
    %v505 = vld [vmem:[#allocation11 + $0xfc] sm:$0xf]
    %v506 = vld [vmem:[%s6] sm:$0x1]
    %v507 = vld [vmem:[#allocation2] sm:$0xff]
    %v508 = vld [vmem:[#allocation2 + $0x8] sm:$0xff]
    %v509 = vld [vmem:[#allocation2 + $0x10] sm:$0xff]
    %v510 = vld [vmem:[#allocation2 + $0x18] sm:$0xff]
    %v511 = vld [vmem:[#allocation2 + $0x20] sm:$0xff]
    %v512 = vld [vmem:[#allocation2 + $0x28] sm:$0xff]
    %v513 = vld [vmem:[#allocation2 + $0x30] sm:$0xff]
    %v514 = vpack.c.bf16 %v507, %v507
    %v515 = vpack.c.bf16 %v508, %v508
    %v516 = vpack.c.bf16 %v509, %v509
    %v517 = vpack.c.bf16 %v510, %v510
    %v518 = vpack.c.bf16 %v511, %v511
    %v519 = vpack.c.bf16 %v512, %v512
    %v520 = vpack.c.bf16 %v513, %v513
    %v522 = vperm.slane %v312, 0
    %v523 = vperm.slane %v312, 1
    %v524 = vperm.slane %v312, 2
    %v525 = vperm.slane %v312, 3
    %v726 = vunpack.c.l.b16 %v116
    %v727 = vunpack.c.h.b16 %v116
    %v728 = vunpack.c.l.b16 %v117
    %v729 = vunpack.c.h.b16 %v117
    %v730 = vunpack.c.l.b16 %v118
    %v731 = vunpack.c.h.b16 %v118
    %v732 = vunpack.c.l.b16 %v119
    %v733 = vunpack.c.h.b16 %v119
    %v734 = vunpack.c.l.b16 %v120
    %v735 = vunpack.c.h.b16 %v120
    %v736 = vunpack.c.l.b16 %v121
    %v737 = vunpack.c.h.b16 %v121
    %v738 = vunpack.c.l.b16 %v122
    %v739 = vunpack.c.h.b16 %v122
    %v740 = vunpack.c.l.b16 %v123
    %v741 = vunpack.c.h.b16 %v123
    %v742 = vunpack.c.l.b16 %v124
    %v743 = vunpack.c.h.b16 %v124
    %v744 = vunpack.c.l.b16 %v125
    %v745 = vunpack.c.h.b16 %v125
    %v746 = vunpack.c.l.b16 %v126
    %v747 = vunpack.c.h.b16 %v126
    %v748 = vunpack.c.l.b16 %v127
    %v749 = vunpack.c.h.b16 %v127
    %v750 = vunpack.c.l.b16 %v128
    %v751 = vunpack.c.h.b16 %v128
    %v752 = vunpack.c.l.b16 %v129
    %v753 = vunpack.c.h.b16 %v129
    %v754 = vunpack.c.l.b16 %v130
    %v755 = vunpack.c.h.b16 %v130
    %v756 = vunpack.c.l.b16 %v131
    %v757 = vunpack.c.h.b16 %v131
    %v758 = vunpack.c.l.b16 %v132
    %v759 = vunpack.c.h.b16 %v132
    %v760 = vunpack.c.l.b16 %v133
    %v761 = vunpack.c.h.b16 %v133
    %v762 = vunpack.c.l.b16 %v134
    %v763 = vunpack.c.h.b16 %v134
    %v764 = vunpack.c.l.b16 %v135
    %v765 = vunpack.c.h.b16 %v135
    %v766 = vunpack.c.l.b16 %v136
    %v767 = vunpack.c.h.b16 %v136
    %v768 = vunpack.c.l.b16 %v137
    %v769 = vunpack.c.h.b16 %v137
    %v770 = vunpack.c.l.b16 %v138
    %v771 = vunpack.c.h.b16 %v138
    %v772 = vunpack.c.l.b16 %v139
    %v773 = vunpack.c.h.b16 %v139
    %v774 = vunpack.c.l.b16 %v140
    %v775 = vunpack.c.h.b16 %v140
    %v776 = vunpack.c.l.b16 %v141
    %v777 = vunpack.c.h.b16 %v141
    %v778 = vunpack.c.l.b16 %v142
    %v779 = vunpack.c.h.b16 %v142
    %v780 = vunpack.c.l.b16 %v143
    %v781 = vunpack.c.h.b16 %v143
    %v782 = vunpack.c.l.b16 %v144
    %v783 = vunpack.c.h.b16 %v144
    %v784 = vunpack.c.l.b16 %v145
    %v785 = vunpack.c.h.b16 %v145
    %v786 = vunpack.c.l.b16 %v146
    %v787 = vunpack.c.h.b16 %v146
    %v788 = vunpack.c.l.b16 %v147
    %v789 = vunpack.c.h.b16 %v147
    %v790 = vunpack.c.l.b16 %v148
    %v791 = vunpack.c.h.b16 %v148
    %v792 = vunpack.c.l.b16 %v149
    %v793 = vunpack.c.h.b16 %v149
    %v794 = vunpack.c.l.b16 %v150
    %v795 = vunpack.c.h.b16 %v150
    %v796 = vunpack.c.l.b16 %v151
    %v797 = vunpack.c.h.b16 %v151
    %v798 = vunpack.c.l.b16 %v152
    %v799 = vunpack.c.h.b16 %v152
    %v800 = vunpack.c.l.b16 %v153
    %v801 = vunpack.c.h.b16 %v153
    %v802 = vunpack.c.l.b16 %v154
    %v803 = vunpack.c.h.b16 %v154
    %v804 = vunpack.c.l.b16 %v155
    %v805 = vunpack.c.h.b16 %v155
    %v806 = vunpack.c.l.b16 %v156
    %v807 = vunpack.c.h.b16 %v156
    %v808 = vunpack.c.l.b16 %v157
    %v809 = vunpack.c.h.b16 %v157
    %v810 = vunpack.c.l.b16 %v158
    %v811 = vunpack.c.h.b16 %v158
    %v812 = vunpack.c.l.b16 %v159
    %v813 = vunpack.c.h.b16 %v159
    %v814 = vunpack.c.l.b16 %v160
    %v815 = vunpack.c.h.b16 %v160
    %v816 = vunpack.c.l.b16 %v161
    %v817 = vunpack.c.h.b16 %v161
    %v818 = vunpack.c.l.b16 %v162
    %v819 = vunpack.c.h.b16 %v162
    %v820 = vunpack.c.l.b16 %v163
    %v821 = vunpack.c.h.b16 %v163
    %v822 = vunpack.c.l.b16 %v164
    %v823 = vunpack.c.h.b16 %v164
    %v824 = vunpack.c.l.b16 %v165
    %v825 = vunpack.c.h.b16 %v165
    %v826 = vunpack.c.l.b16 %v166
    %v827 = vunpack.c.h.b16 %v166
    %v828 = vunpack.c.l.b16 %v167
    %v829 = vunpack.c.h.b16 %v167
    %v830 = vunpack.c.l.b16 %v168
    %v831 = vunpack.c.h.b16 %v168
    %v832 = vunpack.c.l.b16 %v169
    %v833 = vunpack.c.h.b16 %v169
    %v834 = vunpack.c.l.b16 %v170
    %v835 = vunpack.c.h.b16 %v170
    %v836 = vunpack.c.l.b16 %v171
    %v837 = vunpack.c.h.b16 %v171
    %v838 = vunpack.c.l.b16 %v172
    %v839 = vunpack.c.h.b16 %v172
    %v840 = vunpack.c.l.b16 %v173
    %v841 = vunpack.c.h.b16 %v173
    %v842 = vunpack.c.l.b16 %v174
    %v843 = vunpack.c.h.b16 %v174
    %v844 = vunpack.c.l.b16 %v175
    %v845 = vunpack.c.h.b16 %v175
    %v846 = vunpack.c.l.b16 %v176
    %v847 = vunpack.c.h.b16 %v176
    %v848 = vunpack.c.l.b16 %v177
    %v849 = vunpack.c.h.b16 %v177
    %v850 = vunpack.c.l.b16 %v178
    %v851 = vunpack.c.h.b16 %v178
    %v852 = vunpack.c.l.b16 %v179
    %v853 = vunpack.c.h.b16 %v179
    %v854 = vunpack.c.l.b16 %v180
    %v855 = vunpack.c.h.b16 %v180
    %v856 = vunpack.c.l.b16 %v181
    %v857 = vunpack.c.h.b16 %v181
    %v858 = vunpack.c.l.b16 %v182
    %v859 = vunpack.c.h.b16 %v182
    %v860 = vunpack.c.l.b16 %v183
    %v861 = vunpack.c.h.b16 %v183
    %v862 = vunpack.c.l.b16 %v184
    %v863 = vunpack.c.h.b16 %v184
    %v864 = vunpack.c.l.b16 %v185
    %v865 = vunpack.c.h.b16 %v185
    %v866 = vunpack.c.l.b16 %v186
    %v867 = vunpack.c.h.b16 %v186
    %v868 = vunpack.c.l.b16 %v187
    %v869 = vunpack.c.h.b16 %v187
    %v870 = vunpack.c.l.b16 %v188
    %v871 = vunpack.c.h.b16 %v188
    %v872 = vunpack.c.l.b16 %v189
    %v873 = vunpack.c.h.b16 %v189
    %v874 = vunpack.c.l.b16 %v190
    %v875 = vunpack.c.h.b16 %v190
    %v876 = vunpack.c.l.b16 %v191
    %v877 = vunpack.c.h.b16 %v191
    %v878 = vunpack.c.l.b16 %v192
    %v879 = vunpack.c.h.b16 %v192
    %v880 = vunpack.c.l.b16 %v193
    %v881 = vunpack.c.h.b16 %v193
    %v882 = vunpack.c.l.b16 %v194
    %v883 = vunpack.c.h.b16 %v194
    %v884 = vunpack.c.l.b16 %v195
    %v885 = vunpack.c.h.b16 %v195
    %v886 = vunpack.c.l.b16 %v196
    %v887 = vunpack.c.h.b16 %v196
    %v888 = vunpack.c.l.b16 %v197
    %v889 = vunpack.c.h.b16 %v197
    %v890 = vunpack.c.l.b16 %v198
    %v891 = vunpack.c.h.b16 %v198
    %v892 = vunpack.c.l.b16 %v199
    %v893 = vunpack.c.h.b16 %v199
    %v894 = vunpack.c.l.b16 %v200
    %v895 = vunpack.c.h.b16 %v200
    %v896 = vunpack.c.l.b16 %v201
    %v897 = vunpack.c.h.b16 %v201
    %v898 = vunpack.c.l.b16 %v202
    %v899 = vunpack.c.h.b16 %v202
    %v900 = vunpack.c.l.b16 %v203
    %v901 = vunpack.c.h.b16 %v203
    %v902 = vunpack.c.l.b16 %v204
    %v903 = vunpack.c.h.b16 %v204
    %v904 = vunpack.c.l.b16 %v205
    %v905 = vunpack.c.h.b16 %v205
    %v906 = vunpack.c.l.b16 %v206
    %v907 = vunpack.c.h.b16 %v206
    %v908 = vunpack.c.l.b16 %v207
    %v909 = vunpack.c.h.b16 %v207
    %v910 = vunpack.c.l.b16 %v208
    %v911 = vunpack.c.h.b16 %v208
    %v912 = vunpack.c.l.b16 %v209
    %v913 = vunpack.c.h.b16 %v209
    %v914 = vunpack.c.l.b16 %v210
    %v915 = vunpack.c.h.b16 %v210
    %v916 = vunpack.c.l.b16 %v211
    %v917 = vunpack.c.h.b16 %v211
    %v918 = vunpack.c.l.b16 %v212
    %v919 = vunpack.c.h.b16 %v212
    %v920 = vunpack.c.l.b16 %v213
    %v921 = vunpack.c.h.b16 %v213
    %v922 = vunpack.c.l.b16 %v214
    %v923 = vunpack.c.h.b16 %v214
    %v924 = vunpack.c.l.b16 %v215
    %v925 = vunpack.c.h.b16 %v215
    %v926 = vunpack.c.l.b16 %v216
    %v927 = vunpack.c.h.b16 %v216
    %v928 = vunpack.c.l.b16 %v217
    %v929 = vunpack.c.h.b16 %v217
    %v930 = vunpack.c.l.b16 %v218
    %v931 = vunpack.c.h.b16 %v218
    %v932 = vunpack.c.l.b16 %v219
    %v933 = vunpack.c.h.b16 %v219
    %v934 = vunpack.c.l.b16 %v220
    %v935 = vunpack.c.h.b16 %v220
    %v936 = vunpack.c.l.b16 %v221
    %v937 = vunpack.c.h.b16 %v221
    %v938 = vunpack.c.l.b16 %v222
    %v939 = vunpack.c.h.b16 %v222
    %v940 = vunpack.c.l.b16 %v223
    %v941 = vunpack.c.h.b16 %v223
    %v942 = vunpack.c.l.b16 %v224
    %v943 = vunpack.c.h.b16 %v224
    %v944 = vunpack.c.l.b16 %v225
    %v945 = vunpack.c.h.b16 %v225
    %v946 = vunpack.c.l.b16 %v226
    %v947 = vunpack.c.h.b16 %v226
    %v948 = vunpack.c.l.b16 %v227
    %v949 = vunpack.c.h.b16 %v227
    %v950 = vunpack.c.l.b16 %v228
    %v951 = vunpack.c.h.b16 %v228
    %v952 = vunpack.c.l.b16 %v229
    %v953 = vunpack.c.h.b16 %v229
    %v954 = vunpack.c.l.b16 %v230
    %v955 = vunpack.c.h.b16 %v230
    %v956 = vunpack.c.l.b16 %v231
    %v957 = vunpack.c.h.b16 %v231
    %v958 = vunpack.c.l.b16 %v232
    %v959 = vunpack.c.h.b16 %v232
    %v960 = vunpack.c.l.b16 %v233
    %v961 = vunpack.c.h.b16 %v233
    %v962 = vunpack.c.l.b16 %v234
    %v963 = vunpack.c.h.b16 %v234
    %v964 = vunpack.c.l.b16 %v235
    %v965 = vunpack.c.h.b16 %v235
    %v966 = vunpack.c.l.b16 %v236
    %v967 = vunpack.c.h.b16 %v236
    %v968 = vunpack.c.l.b16 %v237
    %v969 = vunpack.c.h.b16 %v237
    %v970 = vunpack.c.l.b16 %v238
    %v971 = vunpack.c.h.b16 %v238
    %v972 = vunpack.c.l.b16 %v239
    %v973 = vunpack.c.h.b16 %v239
    %v974 = vunpack.c.l.b16 %v240
    %v975 = vunpack.c.h.b16 %v240
    %v976 = vunpack.c.l.b16 %v241
    %v977 = vunpack.c.h.b16 %v241
    %v978 = vunpack.c.l.b16 %v242
    %v979 = vunpack.c.h.b16 %v242
    %v980 = vunpack.c.l.b16 %v243
    %v981 = vunpack.c.h.b16 %v243
    %v982 = vunpack.c.l.b16 %v244
    %v983 = vunpack.c.h.b16 %v244
    %v984 = vunpack.c.l.b16 %v245
    %v985 = vunpack.c.h.b16 %v245
    %v986 = vunpack.c.l.b16 %v246
    %v987 = vunpack.c.h.b16 %v246
    %v988 = vunpack.c.l.b16 %v247
    %v989 = vunpack.c.h.b16 %v247
    %v990 = vunpack.c.l.b16 %v248
    %v991 = vunpack.c.h.b16 %v248
    %v992 = vunpack.c.l.b16 %v249
    %v993 = vunpack.c.h.b16 %v249
    %v994 = vunpack.c.l.b16 %v250
    %v995 = vunpack.c.h.b16 %v250
    %v996 = vunpack.c.l.b16 %v251
    %v997 = vunpack.c.h.b16 %v251
    %v998 = vunpack.c.l.b16 %v252
    %v999 = vunpack.c.h.b16 %v252
    %v1000 = vunpack.c.l.b16 %v253
    %v1001 = vunpack.c.h.b16 %v253
    %v1002 = vunpack.c.l.b16 %v254
    %v1003 = vunpack.c.h.b16 %v254
    %v1004 = vunpack.c.l.b16 %v255
    %v1005 = vunpack.c.h.b16 %v255
    %v1006 = vunpack.c.l.b16 %v256
    %v1007 = vunpack.c.h.b16 %v256
    %v1008 = vunpack.c.l.b16 %v257
    %v1009 = vunpack.c.h.b16 %v257
    %v1010 = vunpack.c.l.b16 %v258
    %v1011 = vunpack.c.h.b16 %v258
    %v1012 = vunpack.c.l.b16 %v259
    %v1013 = vunpack.c.h.b16 %v259
    %v1014 = vunpack.c.l.b16 %v260
    %v1015 = vunpack.c.h.b16 %v260
    %v1016 = vunpack.c.l.b16 %v261
    %v1017 = vunpack.c.h.b16 %v261
    %v1018 = vunpack.c.l.b16 %v262
    %v1019 = vunpack.c.h.b16 %v262
    %v1020 = vunpack.c.l.b16 %v263
    %v1021 = vunpack.c.h.b16 %v263
    %v1022 = vunpack.c.l.b16 %v264
    %v1023 = vunpack.c.h.b16 %v264
    %v1024 = vunpack.c.l.b16 %v265
    %v1025 = vunpack.c.h.b16 %v265
    %v1026 = vunpack.c.l.b16 %v266
    %v1027 = vunpack.c.h.b16 %v266
    %v1028 = vunpack.c.l.b16 %v267
    %v1029 = vunpack.c.h.b16 %v267
    %v1030 = vunpack.c.l.b16 %v268
    %v1031 = vunpack.c.h.b16 %v268
    %v1032 = vunpack.c.l.b16 %v269
    %v1033 = vunpack.c.h.b16 %v269
    %v1034 = vunpack.c.l.b16 %v270
    %v1035 = vunpack.c.h.b16 %v270
    %v1036 = vunpack.c.l.b16 %v271
    %v1037 = vunpack.c.h.b16 %v271
    %v1038 = vunpack.c.l.b16 %v272
    %v1039 = vunpack.c.h.b16 %v272
    %v1040 = vunpack.c.l.b16 %v273
    %v1041 = vunpack.c.h.b16 %v273
    %v1042 = vunpack.c.l.b16 %v274
    %v1043 = vunpack.c.h.b16 %v274
    %v1044 = vunpack.c.l.b16 %v275
    %v1045 = vunpack.c.h.b16 %v275
    %v1046 = vunpack.c.l.b16 %v276
    %v1047 = vunpack.c.h.b16 %v276
    %v1048 = vunpack.c.l.b16 %v277
    %v1049 = vunpack.c.h.b16 %v277
    %v1050 = vunpack.c.l.b16 %v278
    %v1051 = vunpack.c.h.b16 %v278
    %v1052 = vunpack.c.l.b16 %v279
    %v1053 = vunpack.c.h.b16 %v279
    %v1054 = vunpack.c.l.b16 %v280
    %v1055 = vunpack.c.h.b16 %v280
    %v1056 = vunpack.c.l.b16 %v281
    %v1057 = vunpack.c.h.b16 %v281
    %v1058 = vunpack.c.l.b16 %v282
    %v1059 = vunpack.c.h.b16 %v282
    %v1060 = vunpack.c.l.b16 %v283
    %v1061 = vunpack.c.h.b16 %v283
    %v1062 = vunpack.c.l.b16 %v284
    %v1063 = vunpack.c.h.b16 %v284
    %v1064 = vunpack.c.l.b16 %v285
    %v1065 = vunpack.c.h.b16 %v285
    %v1066 = vunpack.c.l.b16 %v286
    %v1067 = vunpack.c.h.b16 %v286
    %v1068 = vunpack.c.l.b16 %v287
    %v1069 = vunpack.c.h.b16 %v287
    %v1070 = vunpack.c.l.b16 %v288
    %v1071 = vunpack.c.h.b16 %v288
    %v1072 = vunpack.c.l.b16 %v289
    %v1073 = vunpack.c.h.b16 %v289
    %v1074 = vunpack.c.l.b16 %v290
    %v1075 = vunpack.c.h.b16 %v290
    %v1076 = vunpack.c.l.b16 %v291
    %v1077 = vunpack.c.h.b16 %v291
    %v1078 = vunpack.c.l.b16 %v292
    %v1079 = vunpack.c.h.b16 %v292
    %v1080 = vunpack.c.l.b16 %v293
    %v1081 = vunpack.c.h.b16 %v293
    %v1082 = vunpack.c.l.b16 %v294
    %v1083 = vunpack.c.h.b16 %v294
    %v1084 = vunpack.c.l.b16 %v295
    %v1085 = vunpack.c.h.b16 %v295
    %v1086 = vunpack.c.l.b16 %v296
    %v1087 = vunpack.c.h.b16 %v296
    %v1088 = vunpack.c.l.b16 %v297
    %v1089 = vunpack.c.h.b16 %v297
    %v1090 = vunpack.c.l.b16 %v298
    %v1091 = vunpack.c.h.b16 %v298
    %v1092 = vunpack.c.l.b16 %v299
    %v1093 = vunpack.c.h.b16 %v299
    %v1094 = vunpack.c.l.b16 %v300
    %v1095 = vunpack.c.h.b16 %v300
    %v1096 = vunpack.c.l.b16 %v301
    %v1097 = vunpack.c.h.b16 %v301
    %v1098 = vunpack.c.l.b16 %v302
    %v1099 = vunpack.c.h.b16 %v302
    %v1100 = vunpack.c.l.b16 %v303
    %v1101 = vunpack.c.h.b16 %v303
    %v1102 = vunpack.c.l.b16 %v304
    %v1103 = vunpack.c.h.b16 %v304
    %v1104 = vunpack.c.l.b16 %v305
    %v1105 = vunpack.c.h.b16 %v305
    %v1106 = vunpack.c.l.b16 %v306
    %v1107 = vunpack.c.h.b16 %v306
    %v1108 = vunpack.c.l.b16 %v307
    %v1109 = vunpack.c.h.b16 %v307
    %v1110 = vunpack.c.l.b16 %v308
    %v1111 = vunpack.c.h.b16 %v308
    %v1112 = vunpack.c.l.b16 %v309
    %v1113 = vunpack.c.h.b16 %v309
    %v1114 = vunpack.c.l.b16 %v310
    %v1115 = vunpack.c.h.b16 %v310
    %v1116 = vunpack.c.l.b16 %v311
    %v1117 = vunpack.c.h.b16 %v311
    %v1118 = vpack.c.b16 %v730, %v726
    %v1119 = vpack.c.b16 %v731, %v727
    %v1120 = vpack.c.b16 %v732, %v728
    %v1121 = vpack.c.b16 %v733, %v729
    %v1122 = vpack.c.b16 %v738, %v734
    %v1123 = vpack.c.b16 %v739, %v735
    %v1124 = vpack.c.b16 %v740, %v736
    %v1125 = vpack.c.b16 %v741, %v737
    %v1126 = vpack.c.b16 %v746, %v742
    %v1127 = vpack.c.b16 %v747, %v743
    %v1128 = vpack.c.b16 %v748, %v744
    %v1129 = vpack.c.b16 %v749, %v745
    %v1130 = vpack.c.b16 %v754, %v750
    %v1131 = vpack.c.b16 %v755, %v751
    %v1132 = vpack.c.b16 %v756, %v752
    %v1133 = vpack.c.b16 %v757, %v753
    %v1134 = vpack.c.b16 %v762, %v758
    %v1135 = vpack.c.b16 %v763, %v759
    %v1136 = vpack.c.b16 %v764, %v760
    %v1137 = vpack.c.b16 %v765, %v761
    %v1138 = vpack.c.b16 %v770, %v766
    %v1139 = vpack.c.b16 %v771, %v767
    %v1140 = vpack.c.b16 %v772, %v768
    %v1141 = vpack.c.b16 %v773, %v769
    %v1142 = vpack.c.b16 %v778, %v774
    %v1143 = vpack.c.b16 %v779, %v775
    %v1144 = vpack.c.b16 %v780, %v776
    %v1145 = vpack.c.b16 %v781, %v777
    %v1146 = vpack.c.b16 %v786, %v782
    %v1147 = vpack.c.b16 %v787, %v783
    %v1148 = vpack.c.b16 %v788, %v784
    %v1149 = vpack.c.b16 %v789, %v785
    %v1150 = vpack.c.b16 %v794, %v790
    %v1151 = vpack.c.b16 %v795, %v791
    %v1152 = vpack.c.b16 %v796, %v792
    %v1153 = vpack.c.b16 %v797, %v793
    %v1154 = vpack.c.b16 %v802, %v798
    %v1155 = vpack.c.b16 %v803, %v799
    %v1156 = vpack.c.b16 %v804, %v800
    %v1157 = vpack.c.b16 %v805, %v801
    %v1158 = vpack.c.b16 %v810, %v806
    %v1159 = vpack.c.b16 %v811, %v807
    %v1160 = vpack.c.b16 %v812, %v808
    %v1161 = vpack.c.b16 %v813, %v809
    %v1162 = vpack.c.b16 %v818, %v814
    %v1163 = vpack.c.b16 %v819, %v815
    %v1164 = vpack.c.b16 %v820, %v816
    %v1165 = vpack.c.b16 %v821, %v817
    %v1166 = vpack.c.b16 %v826, %v822
    %v1167 = vpack.c.b16 %v827, %v823
    %v1168 = vpack.c.b16 %v828, %v824
    %v1169 = vpack.c.b16 %v829, %v825
    %v1170 = vpack.c.b16 %v834, %v830
    %v1171 = vpack.c.b16 %v835, %v831
    %v1172 = vpack.c.b16 %v836, %v832
    %v1173 = vpack.c.b16 %v837, %v833
    %v1174 = vpack.c.b16 %v842, %v838
    %v1175 = vpack.c.b16 %v843, %v839
    %v1176 = vpack.c.b16 %v844, %v840
    %v1177 = vpack.c.b16 %v845, %v841
    %v1178 = vpack.c.b16 %v850, %v846
    %v1179 = vpack.c.b16 %v851, %v847
    %v1180 = vpack.c.b16 %v852, %v848
    %v1181 = vpack.c.b16 %v853, %v849
    %v1182 = vpack.c.b16 %v858, %v854
    %v1183 = vpack.c.b16 %v859, %v855
    %v1184 = vpack.c.b16 %v860, %v856
    %v1185 = vpack.c.b16 %v861, %v857
    %v1186 = vpack.c.b16 %v866, %v862
    %v1187 = vpack.c.b16 %v867, %v863
    %v1188 = vpack.c.b16 %v868, %v864
    %v1189 = vpack.c.b16 %v869, %v865
    %v1190 = vpack.c.b16 %v874, %v870
    %v1191 = vpack.c.b16 %v875, %v871
    %v1192 = vpack.c.b16 %v876, %v872
    %v1193 = vpack.c.b16 %v877, %v873
    %v1194 = vpack.c.b16 %v882, %v878
    %v1195 = vpack.c.b16 %v883, %v879
    %v1196 = vpack.c.b16 %v884, %v880
    %v1197 = vpack.c.b16 %v885, %v881
    %v1198 = vpack.c.b16 %v890, %v886
    %v1199 = vpack.c.b16 %v891, %v887
    %v1200 = vpack.c.b16 %v892, %v888
    %v1201 = vpack.c.b16 %v893, %v889
    %v1202 = vpack.c.b16 %v898, %v894
    %v1203 = vpack.c.b16 %v899, %v895
    %v1204 = vpack.c.b16 %v900, %v896
    %v1205 = vpack.c.b16 %v901, %v897
    %v1206 = vpack.c.b16 %v906, %v902
    %v1207 = vpack.c.b16 %v907, %v903
    %v1208 = vpack.c.b16 %v908, %v904
    %v1209 = vpack.c.b16 %v909, %v905
    %v1210 = vpack.c.b16 %v914, %v910
    %v1211 = vpack.c.b16 %v915, %v911
    %v1212 = vpack.c.b16 %v916, %v912
    %v1213 = vpack.c.b16 %v917, %v913
    %v1214 = vpack.c.b16 %v922, %v918
    %v1215 = vpack.c.b16 %v923, %v919
    %v1216 = vpack.c.b16 %v924, %v920
    %v1217 = vpack.c.b16 %v925, %v921
    %v1218 = vpack.c.b16 %v930, %v926
    %v1219 = vpack.c.b16 %v931, %v927
    %v1220 = vpack.c.b16 %v932, %v928
    %v1221 = vpack.c.b16 %v933, %v929
    %v1222 = vpack.c.b16 %v938, %v934
    %v1223 = vpack.c.b16 %v939, %v935
    %v1224 = vpack.c.b16 %v940, %v936
    %v1225 = vpack.c.b16 %v941, %v937
    %v1226 = vpack.c.b16 %v946, %v942
    %v1227 = vpack.c.b16 %v947, %v943
    %v1228 = vpack.c.b16 %v948, %v944
    %v1229 = vpack.c.b16 %v949, %v945
    %v1230 = vpack.c.b16 %v954, %v950
    %v1231 = vpack.c.b16 %v955, %v951
    %v1232 = vpack.c.b16 %v956, %v952
    %v1233 = vpack.c.b16 %v957, %v953
    %v1234 = vpack.c.b16 %v962, %v958
    %v1235 = vpack.c.b16 %v963, %v959
    %v1236 = vpack.c.b16 %v964, %v960
    %v1237 = vpack.c.b16 %v965, %v961
    %v1238 = vpack.c.b16 %v970, %v966
    %v1239 = vpack.c.b16 %v971, %v967
    %v1240 = vpack.c.b16 %v972, %v968
    %v1241 = vpack.c.b16 %v973, %v969
    %v1242 = vpack.c.b16 %v978, %v974
    %v1243 = vpack.c.b16 %v979, %v975
    %v1244 = vpack.c.b16 %v980, %v976
    %v1245 = vpack.c.b16 %v981, %v977
    %v1246 = vpack.c.b16 %v986, %v982
    %v1247 = vpack.c.b16 %v987, %v983
    %v1248 = vpack.c.b16 %v988, %v984
    %v1249 = vpack.c.b16 %v989, %v985
    %v1250 = vpack.c.b16 %v994, %v990
    %v1251 = vpack.c.b16 %v995, %v991
    %v1252 = vpack.c.b16 %v996, %v992
    %v1253 = vpack.c.b16 %v997, %v993
    %v1254 = vpack.c.b16 %v1002, %v998
    %v1255 = vpack.c.b16 %v1003, %v999
    %v1256 = vpack.c.b16 %v1004, %v1000
    %v1257 = vpack.c.b16 %v1005, %v1001
    %v1258 = vpack.c.b16 %v1010, %v1006
    %v1259 = vpack.c.b16 %v1011, %v1007
    %v1260 = vpack.c.b16 %v1012, %v1008
    %v1261 = vpack.c.b16 %v1013, %v1009
    %v1262 = vpack.c.b16 %v1018, %v1014
    %v1263 = vpack.c.b16 %v1019, %v1015
    %v1264 = vpack.c.b16 %v1020, %v1016
    %v1265 = vpack.c.b16 %v1021, %v1017
    %v1266 = vpack.c.b16 %v1026, %v1022
    %v1267 = vpack.c.b16 %v1027, %v1023
    %v1268 = vpack.c.b16 %v1028, %v1024
    %v1269 = vpack.c.b16 %v1029, %v1025
    %v1270 = vpack.c.b16 %v1034, %v1030
    %v1271 = vpack.c.b16 %v1035, %v1031
    %v1272 = vpack.c.b16 %v1036, %v1032
    %v1273 = vpack.c.b16 %v1037, %v1033
    %v1274 = vpack.c.b16 %v1042, %v1038
    %v1275 = vpack.c.b16 %v1043, %v1039
    %v1276 = vpack.c.b16 %v1044, %v1040
    %v1277 = vpack.c.b16 %v1045, %v1041
    %v1278 = vpack.c.b16 %v1050, %v1046
    %v1279 = vpack.c.b16 %v1051, %v1047
    %v1280 = vpack.c.b16 %v1052, %v1048
    %v1281 = vpack.c.b16 %v1053, %v1049
    %v1282 = vpack.c.b16 %v1058, %v1054
    %v1283 = vpack.c.b16 %v1059, %v1055
    %v1284 = vpack.c.b16 %v1060, %v1056
    %v1285 = vpack.c.b16 %v1061, %v1057
    %v1286 = vpack.c.b16 %v1066, %v1062
    %v1287 = vpack.c.b16 %v1067, %v1063
    %v1288 = vpack.c.b16 %v1068, %v1064
    %v1289 = vpack.c.b16 %v1069, %v1065
    %v1290 = vpack.c.b16 %v1074, %v1070
    %v1291 = vpack.c.b16 %v1075, %v1071
    %v1292 = vpack.c.b16 %v1076, %v1072
    %v1293 = vpack.c.b16 %v1077, %v1073
    %v1294 = vpack.c.b16 %v1082, %v1078
    %v1295 = vpack.c.b16 %v1083, %v1079
    %v1296 = vpack.c.b16 %v1084, %v1080
    %v1297 = vpack.c.b16 %v1085, %v1081
    %v1298 = vpack.c.b16 %v1090, %v1086
    %v1299 = vpack.c.b16 %v1091, %v1087
    %v1300 = vpack.c.b16 %v1092, %v1088
    %v1301 = vpack.c.b16 %v1093, %v1089
    %v1302 = vpack.c.b16 %v1098, %v1094
    %v1303 = vpack.c.b16 %v1099, %v1095
    %v1304 = vpack.c.b16 %v1100, %v1096
    %v1305 = vpack.c.b16 %v1101, %v1097
    %v1306 = vpack.c.b16 %v1106, %v1102
    %v1307 = vpack.c.b16 %v1107, %v1103
    %v1308 = vpack.c.b16 %v1108, %v1104
    %v1309 = vpack.c.b16 %v1109, %v1105
    %v1310 = vpack.c.b16 %v1114, %v1110
    %v1311 = vpack.c.b16 %v1115, %v1111
    %v1312 = vpack.c.b16 %v1116, %v1112
    %v1313 = vpack.c.b16 %v1117, %v1113
    %vm1510 = vcmask 130048
    %v1512 = vsel %vm1510, %v520, 0
    %1514 = vmatpush.bf16.msra.mxu0 %v1146
    %1515 = vmatpush.bf16.msra.mxu0 %v1142
    %1516 = vmatpush.bf16.msra.mxu0 %v1138
    %1517 = vmatpush.bf16.msra.mxu0 %v1134
    %1518 = vmatpush.bf16.msra.mxu0 %v1130
    %1519 = vmatpush.bf16.msra.mxu0 %v1126
    %1520 = vmatpush.bf16.msra.mxu0 %v1122
    %1521 = vmatpush.bf16.msra.mxu0 %v1118
    %1522 = vmatmul.bf16.gmra.mxu0 %v514
    %v1523 = vpop.f32.mrf.mxu0
    %v1524 = vadd.f32 %v522, %v1523
    %v1525 = vpop.f32.mrf.mxu0
    %1526 = vdwg.mxu0
    %1527 = vmatpush.bf16.msra.mxu0 %v1178
    %1528 = vmatpush.bf16.msra.mxu0 %v1174
    %1529 = vmatpush.bf16.msra.mxu0 %v1170
    %1530 = vmatpush.bf16.msra.mxu0 %v1166
    %1531 = vmatpush.bf16.msra.mxu0 %v1162
    %1532 = vmatpush.bf16.msra.mxu0 %v1158
    %1533 = vmatpush.bf16.msra.mxu0 %v1154
    %1534 = vmatpush.bf16.msra.mxu0 %v1150
    %1535 = vmatmul.bf16.gmra.mxu0 %v515
    %v1536 = vpop.f32.mrf.mxu0
    %v1537 = vadd.f32 %v1524, %v1536
    %v1538 = vpop.f32.mrf.mxu0
    %1539 = vdwg.mxu0
    %1540 = vmatpush.bf16.msra.mxu0 %v1210
    %1541 = vmatpush.bf16.msra.mxu0 %v1206
    %1542 = vmatpush.bf16.msra.mxu0 %v1202
    %1543 = vmatpush.bf16.msra.mxu0 %v1198
    %1544 = vmatpush.bf16.msra.mxu0 %v1194
    %1545 = vmatpush.bf16.msra.mxu0 %v1190
    %1546 = vmatpush.bf16.msra.mxu0 %v1186
    %1547 = vmatpush.bf16.msra.mxu0 %v1182
    %1548 = vmatmul.bf16.gmra.mxu0 %v516
    %v1549 = vpop.f32.mrf.mxu0
    %v1550 = vadd.f32 %v1537, %v1549
    %v1551 = vpop.f32.mrf.mxu0
    %1552 = vdwg.mxu0
    %1553 = vmatpush.bf16.msra.mxu0 %v1242
    %1554 = vmatpush.bf16.msra.mxu0 %v1238
    %1555 = vmatpush.bf16.msra.mxu0 %v1234
    %1556 = vmatpush.bf16.msra.mxu0 %v1230
    %1557 = vmatpush.bf16.msra.mxu0 %v1226
    %1558 = vmatpush.bf16.msra.mxu0 %v1222
    %1559 = vmatpush.bf16.msra.mxu0 %v1218
    %1560 = vmatpush.bf16.msra.mxu0 %v1214
    %1561 = vmatmul.bf16.gmra.mxu0 %v517
    %v1562 = vpop.f32.mrf.mxu0
    %v1563 = vadd.f32 %v1550, %v1562
    %v1564 = vpop.f32.mrf.mxu0
    %1565 = vdwg.mxu0
    %1566 = vmatpush.bf16.msra.mxu0 %v1274
    %1567 = vmatpush.bf16.msra.mxu0 %v1270
    %1568 = vmatpush.bf16.msra.mxu0 %v1266
    %1569 = vmatpush.bf16.msra.mxu0 %v1262
    %1570 = vmatpush.bf16.msra.mxu0 %v1258
    %1571 = vmatpush.bf16.msra.mxu0 %v1254
    %1572 = vmatpush.bf16.msra.mxu0 %v1250
    %1573 = vmatpush.bf16.msra.mxu0 %v1246
    %1574 = vmatmul.bf16.gmra.mxu0 %v518
    %v1575 = vpop.f32.mrf.mxu0
    %v1576 = vadd.f32 %v1563, %v1575
    %v1577 = vpop.f32.mrf.mxu0
    %1578 = vdwg.mxu0
    %1579 = vmatpush.bf16.msra.mxu0 %v1306
    %1580 = vmatpush.bf16.msra.mxu0 %v1302
    %1581 = vmatpush.bf16.msra.mxu0 %v1298
    %1582 = vmatpush.bf16.msra.mxu0 %v1294
    %1583 = vmatpush.bf16.msra.mxu0 %v1290
    %1584 = vmatpush.bf16.msra.mxu0 %v1286
    %1585 = vmatpush.bf16.msra.mxu0 %v1282
    %1586 = vmatpush.bf16.msra.mxu0 %v1278
    %1587 = vmatmul.bf16.gmra.mxu0 %v519
    %v1588 = vpop.f32.mrf.mxu0
    %v1589 = vadd.f32 %v1576, %v1588
    %v1590 = vpop.f32.mrf.mxu0
    %1591 = vdwg.mxu0
    %1592 = vmatpush.bf16.msra.mxu0 0
    %1593 = vmatpush.bf16.msra.mxu0 0
    %1594 = vmatpush.bf16.msra.mxu0 0
    %1595 = vmatpush.bf16.msra.mxu0 0
    %1596 = vmatpush.bf16.msra.mxu0 0
    %1597 = vmatpush.bf16.msra.mxu0 0
    %1598 = vmatpush.bf16.msra.mxu0 0
    %1599 = vmatpush.bf16.msra.mxu0 %v1310
    %1600 = vmatmul.bf16.gmra.mxu0 %v1512
    %v1601 = vpop.f32.mrf.mxu0
    %v1602 = vadd.f32 %v1589, %v1601
    %v1603 = vpop.f32.mrf.mxu0
    %1604 = vdwg.mxu0
    %1605 = vmatpush.bf16.msra.mxu0 %v1147
    %1606 = vmatpush.bf16.msra.mxu0 %v1143
    %1607 = vmatpush.bf16.msra.mxu0 %v1139
    %1608 = vmatpush.bf16.msra.mxu0 %v1135
    %1609 = vmatpush.bf16.msra.mxu0 %v1131
    %1610 = vmatpush.bf16.msra.mxu0 %v1127
    %1611 = vmatpush.bf16.msra.mxu0 %v1123
    %1612 = vmatpush.bf16.msra.mxu0 %v1119
    %1613 = vmatmul.bf16.gmra.mxu0 %v514
    %v1614 = vpop.f32.mrf.mxu0
    %v1615 = vadd.f32 %v523, %v1614
    %v1616 = vpop.f32.mrf.mxu0
    %1617 = vdwg.mxu0
    %1618 = vmatpush.bf16.msra.mxu0 %v1179
    %1619 = vmatpush.bf16.msra.mxu0 %v1175
    %1620 = vmatpush.bf16.msra.mxu0 %v1171
    %1621 = vmatpush.bf16.msra.mxu0 %v1167
    %1622 = vmatpush.bf16.msra.mxu0 %v1163
    %1623 = vmatpush.bf16.msra.mxu0 %v1159
    %1624 = vmatpush.bf16.msra.mxu0 %v1155
    %1625 = vmatpush.bf16.msra.mxu0 %v1151
    %1626 = vmatmul.bf16.gmra.mxu0 %v515
    %v1627 = vpop.f32.mrf.mxu0
    %v1628 = vadd.f32 %v1615, %v1627
    %v1629 = vpop.f32.mrf.mxu0
    %1630 = vdwg.mxu0
    %1631 = vmatpush.bf16.msra.mxu0 %v1211
    %1632 = vmatpush.bf16.msra.mxu0 %v1207
    %1633 = vmatpush.bf16.msra.mxu0 %v1203
    %1634 = vmatpush.bf16.msra.mxu0 %v1199
    %1635 = vmatpush.bf16.msra.mxu0 %v1195
    %1636 = vmatpush.bf16.msra.mxu0 %v1191
    %1637 = vmatpush.bf16.msra.mxu0 %v1187
    %1638 = vmatpush.bf16.msra.mxu0 %v1183
    %1639 = vmatmul.bf16.gmra.mxu0 %v516
    %v1640 = vpop.f32.mrf.mxu0
    %v1641 = vadd.f32 %v1628, %v1640
    %v1642 = vpop.f32.mrf.mxu0
    %1643 = vdwg.mxu0
    %1644 = vmatpush.bf16.msra.mxu0 %v1243
    %1645 = vmatpush.bf16.msra.mxu0 %v1239
    %1646 = vmatpush.bf16.msra.mxu0 %v1235
    %1647 = vmatpush.bf16.msra.mxu0 %v1231
    %1648 = vmatpush.bf16.msra.mxu0 %v1227
    %1649 = vmatpush.bf16.msra.mxu0 %v1223
    %1650 = vmatpush.bf16.msra.mxu0 %v1219
    %1651 = vmatpush.bf16.msra.mxu0 %v1215
    %1652 = vmatmul.bf16.gmra.mxu0 %v517
    %v1653 = vpop.f32.mrf.mxu0
    %v1654 = vadd.f32 %v1641, %v1653
    %v1655 = vpop.f32.mrf.mxu0
    %1656 = vdwg.mxu0
    %1657 = vmatpush.bf16.msra.mxu0 %v1275
    %1658 = vmatpush.bf16.msra.mxu0 %v1271
    %1659 = vmatpush.bf16.msra.mxu0 %v1267
    %1660 = vmatpush.bf16.msra.mxu0 %v1263
    %1661 = vmatpush.bf16.msra.mxu0 %v1259
    %1662 = vmatpush.bf16.msra.mxu0 %v1255
    %1663 = vmatpush.bf16.msra.mxu0 %v1251
    %1664 = vmatpush.bf16.msra.mxu0 %v1247
    %1665 = vmatmul.bf16.gmra.mxu0 %v518
    %v1666 = vpop.f32.mrf.mxu0
    %v1667 = vadd.f32 %v1654, %v1666
    %v1668 = vpop.f32.mrf.mxu0
    %1669 = vdwg.mxu0
    %1670 = vmatpush.bf16.msra.mxu0 %v1307
    %1671 = vmatpush.bf16.msra.mxu0 %v1303
    %1672 = vmatpush.bf16.msra.mxu0 %v1299
    %1673 = vmatpush.bf16.msra.mxu0 %v1295
    %1674 = vmatpush.bf16.msra.mxu0 %v1291
    %1675 = vmatpush.bf16.msra.mxu0 %v1287
    %1676 = vmatpush.bf16.msra.mxu0 %v1283
    %1677 = vmatpush.bf16.msra.mxu0 %v1279
    %1678 = vmatmul.bf16.gmra.mxu0 %v519
    %v1679 = vpop.f32.mrf.mxu0
    %v1680 = vadd.f32 %v1667, %v1679
    %v1681 = vpop.f32.mrf.mxu0
    %1682 = vdwg.mxu0
    %1683 = vmatpush.bf16.msra.mxu0 0
    %1684 = vmatpush.bf16.msra.mxu0 0
    %1685 = vmatpush.bf16.msra.mxu0 0
    %1686 = vmatpush.bf16.msra.mxu0 0
    %1687 = vmatpush.bf16.msra.mxu0 0
    %1688 = vmatpush.bf16.msra.mxu0 0
    %1689 = vmatpush.bf16.msra.mxu0 0
    %1690 = vmatpush.bf16.msra.mxu0 %v1311
    %1691 = vmatmul.bf16.gmra.mxu0 %v1512
    %v1692 = vpop.f32.mrf.mxu0
    %v1693 = vadd.f32 %v1680, %v1692
    %v1694 = vpop.f32.mrf.mxu0
    %1695 = vdwg.mxu0
    %1696 = vmatpush.bf16.msra.mxu0 %v1148
    %1697 = vmatpush.bf16.msra.mxu0 %v1144
    %1698 = vmatpush.bf16.msra.mxu0 %v1140
    %1699 = vmatpush.bf16.msra.mxu0 %v1136
    %1700 = vmatpush.bf16.msra.mxu0 %v1132
    %1701 = vmatpush.bf16.msra.mxu0 %v1128
    %1702 = vmatpush.bf16.msra.mxu0 %v1124
    %1703 = vmatpush.bf16.msra.mxu0 %v1120
    %1704 = vmatmul.bf16.gmra.mxu0 %v514
    %v1705 = vpop.f32.mrf.mxu0
    %v1706 = vadd.f32 %v524, %v1705
    %v1707 = vpop.f32.mrf.mxu0
    %1708 = vdwg.mxu0
    %1709 = vmatpush.bf16.msra.mxu0 %v1180
    %1710 = vmatpush.bf16.msra.mxu0 %v1176
    %1711 = vmatpush.bf16.msra.mxu0 %v1172
    %1712 = vmatpush.bf16.msra.mxu0 %v1168
    %1713 = vmatpush.bf16.msra.mxu0 %v1164
    %1714 = vmatpush.bf16.msra.mxu0 %v1160
    %1715 = vmatpush.bf16.msra.mxu0 %v1156
    %1716 = vmatpush.bf16.msra.mxu0 %v1152
    %1717 = vmatmul.bf16.gmra.mxu0 %v515
    %v1718 = vpop.f32.mrf.mxu0
    %v1719 = vadd.f32 %v1706, %v1718
    %v1720 = vpop.f32.mrf.mxu0
    %1721 = vdwg.mxu0
    %1722 = vmatpush.bf16.msra.mxu0 %v1212
    %1723 = vmatpush.bf16.msra.mxu0 %v1208
    %1724 = vmatpush.bf16.msra.mxu0 %v1204
    %1725 = vmatpush.bf16.msra.mxu0 %v1200
    %1726 = vmatpush.bf16.msra.mxu0 %v1196
    %1727 = vmatpush.bf16.msra.mxu0 %v1192
    %1728 = vmatpush.bf16.msra.mxu0 %v1188
    %1729 = vmatpush.bf16.msra.mxu0 %v1184
    %1730 = vmatmul.bf16.gmra.mxu0 %v516
    %v1731 = vpop.f32.mrf.mxu0
    %v1732 = vadd.f32 %v1719, %v1731
    %v1733 = vpop.f32.mrf.mxu0
    %1734 = vdwg.mxu0
    %1735 = vmatpush.bf16.msra.mxu0 %v1244
    %1736 = vmatpush.bf16.msra.mxu0 %v1240
    %1737 = vmatpush.bf16.msra.mxu0 %v1236
    %1738 = vmatpush.bf16.msra.mxu0 %v1232
    %1739 = vmatpush.bf16.msra.mxu0 %v1228
    %1740 = vmatpush.bf16.msra.mxu0 %v1224
    %1741 = vmatpush.bf16.msra.mxu0 %v1220
    %1742 = vmatpush.bf16.msra.mxu0 %v1216
    %1743 = vmatmul.bf16.gmra.mxu0 %v517
    %v1744 = vpop.f32.mrf.mxu0
    %v1745 = vadd.f32 %v1732, %v1744
    %v1746 = vpop.f32.mrf.mxu0
    %1747 = vdwg.mxu0
    %1748 = vmatpush.bf16.msra.mxu0 %v1276
    %1749 = vmatpush.bf16.msra.mxu0 %v1272
    %1750 = vmatpush.bf16.msra.mxu0 %v1268
    %1751 = vmatpush.bf16.msra.mxu0 %v1264
    %1752 = vmatpush.bf16.msra.mxu0 %v1260
    %1753 = vmatpush.bf16.msra.mxu0 %v1256
    %1754 = vmatpush.bf16.msra.mxu0 %v1252
    %1755 = vmatpush.bf16.msra.mxu0 %v1248
    %1756 = vmatmul.bf16.gmra.mxu0 %v518
    %v1757 = vpop.f32.mrf.mxu0
    %v1758 = vadd.f32 %v1745, %v1757
    %v1759 = vpop.f32.mrf.mxu0
    %1760 = vdwg.mxu0
    %1761 = vmatpush.bf16.msra.mxu0 %v1308
    %1762 = vmatpush.bf16.msra.mxu0 %v1304
    %1763 = vmatpush.bf16.msra.mxu0 %v1300
    %1764 = vmatpush.bf16.msra.mxu0 %v1296
    %1765 = vmatpush.bf16.msra.mxu0 %v1292
    %1766 = vmatpush.bf16.msra.mxu0 %v1288
    %1767 = vmatpush.bf16.msra.mxu0 %v1284
    %1768 = vmatpush.bf16.msra.mxu0 %v1280
    %1769 = vmatmul.bf16.gmra.mxu0 %v519
    %v1770 = vpop.f32.mrf.mxu0
    %v1771 = vadd.f32 %v1758, %v1770
    %v1772 = vpop.f32.mrf.mxu0
    %1773 = vdwg.mxu0
    %1774 = vmatpush.bf16.msra.mxu0 0
    %1775 = vmatpush.bf16.msra.mxu0 0
    %1776 = vmatpush.bf16.msra.mxu0 0
    %1777 = vmatpush.bf16.msra.mxu0 0
    %1778 = vmatpush.bf16.msra.mxu0 0
    %1779 = vmatpush.bf16.msra.mxu0 0
    %1780 = vmatpush.bf16.msra.mxu0 0
    %1781 = vmatpush.bf16.msra.mxu0 %v1312
    %1782 = vmatmul.bf16.gmra.mxu0 %v1512
    %v1783 = vpop.f32.mrf.mxu0
    %v1784 = vadd.f32 %v1771, %v1783
    %v1785 = vpop.f32.mrf.mxu0
    %1786 = vdwg.mxu0
    %1787 = vmatpush.bf16.msra.mxu0 %v1149
    %1788 = vmatpush.bf16.msra.mxu0 %v1145
    %1789 = vmatpush.bf16.msra.mxu0 %v1141
    %1790 = vmatpush.bf16.msra.mxu0 %v1137
    %1791 = vmatpush.bf16.msra.mxu0 %v1133
    %1792 = vmatpush.bf16.msra.mxu0 %v1129
    %1793 = vmatpush.bf16.msra.mxu0 %v1125
    %1794 = vmatpush.bf16.msra.mxu0 %v1121
    %1795 = vmatmul.bf16.gmra.mxu0 %v514
    %v1796 = vpop.f32.mrf.mxu0
    %v1797 = vadd.f32 %v525, %v1796
    %v1798 = vpop.f32.mrf.mxu0
    %1799 = vdwg.mxu0
    %1800 = vmatpush.bf16.msra.mxu0 %v1181
    %1801 = vmatpush.bf16.msra.mxu0 %v1177
    %1802 = vmatpush.bf16.msra.mxu0 %v1173
    %1803 = vmatpush.bf16.msra.mxu0 %v1169
    %1804 = vmatpush.bf16.msra.mxu0 %v1165
    %1805 = vmatpush.bf16.msra.mxu0 %v1161
    %1806 = vmatpush.bf16.msra.mxu0 %v1157
    %1807 = vmatpush.bf16.msra.mxu0 %v1153
    %1808 = vmatmul.bf16.gmra.mxu0 %v515
    %v1809 = vpop.f32.mrf.mxu0
    %v1810 = vadd.f32 %v1797, %v1809
    %v1811 = vpop.f32.mrf.mxu0
    %1812 = vdwg.mxu0
    %1813 = vmatpush.bf16.msra.mxu0 %v1213
    %1814 = vmatpush.bf16.msra.mxu0 %v1209
    %1815 = vmatpush.bf16.msra.mxu0 %v1205
    %1816 = vmatpush.bf16.msra.mxu0 %v1201
    %1817 = vmatpush.bf16.msra.mxu0 %v1197
    %1818 = vmatpush.bf16.msra.mxu0 %v1193
    %1819 = vmatpush.bf16.msra.mxu0 %v1189
    %1820 = vmatpush.bf16.msra.mxu0 %v1185
    %1821 = vmatmul.bf16.gmra.mxu0 %v516
    %v1822 = vpop.f32.mrf.mxu0
    %v1823 = vadd.f32 %v1810, %v1822
    %v1824 = vpop.f32.mrf.mxu0
    %1825 = vdwg.mxu0
    %1826 = vmatpush.bf16.msra.mxu0 %v1245
    %1827 = vmatpush.bf16.msra.mxu0 %v1241
    %1828 = vmatpush.bf16.msra.mxu0 %v1237
    %1829 = vmatpush.bf16.msra.mxu0 %v1233
    %1830 = vmatpush.bf16.msra.mxu0 %v1229
    %1831 = vmatpush.bf16.msra.mxu0 %v1225
    %1832 = vmatpush.bf16.msra.mxu0 %v1221
    %1833 = vmatpush.bf16.msra.mxu0 %v1217
    %1834 = vmatmul.bf16.gmra.mxu0 %v517
    %v1835 = vpop.f32.mrf.mxu0
    %v1836 = vadd.f32 %v1823, %v1835
    %v1837 = vpop.f32.mrf.mxu0
    %1838 = vdwg.mxu0
    %1839 = vmatpush.bf16.msra.mxu0 %v1277
    %1840 = vmatpush.bf16.msra.mxu0 %v1273
    %1841 = vmatpush.bf16.msra.mxu0 %v1269
    %1842 = vmatpush.bf16.msra.mxu0 %v1265
    %1843 = vmatpush.bf16.msra.mxu0 %v1261
    %1844 = vmatpush.bf16.msra.mxu0 %v1257
    %1845 = vmatpush.bf16.msra.mxu0 %v1253
    %1846 = vmatpush.bf16.msra.mxu0 %v1249
    %1847 = vmatmul.bf16.gmra.mxu0 %v518
    %v1848 = vpop.f32.mrf.mxu0
    %v1849 = vadd.f32 %v1836, %v1848
    %v1850 = vpop.f32.mrf.mxu0
    %1851 = vdwg.mxu0
    %1852 = vmatpush.bf16.msra.mxu0 %v1309
    %1853 = vmatpush.bf16.msra.mxu0 %v1305
    %1854 = vmatpush.bf16.msra.mxu0 %v1301
    %1855 = vmatpush.bf16.msra.mxu0 %v1297
    %1856 = vmatpush.bf16.msra.mxu0 %v1293
    %1857 = vmatpush.bf16.msra.mxu0 %v1289
    %1858 = vmatpush.bf16.msra.mxu0 %v1285
    %1859 = vmatpush.bf16.msra.mxu0 %v1281
    %1860 = vmatmul.bf16.gmra.mxu0 %v519
    %v1861 = vpop.f32.mrf.mxu0
    %v1862 = vadd.f32 %v1849, %v1861
    %v1863 = vpop.f32.mrf.mxu0
    %1864 = vdwg.mxu0
    %1865 = vmatpush.bf16.msra.mxu0 0
    %1866 = vmatpush.bf16.msra.mxu0 0
    %1867 = vmatpush.bf16.msra.mxu0 0
    %1868 = vmatpush.bf16.msra.mxu0 0
    %1869 = vmatpush.bf16.msra.mxu0 0
    %1870 = vmatpush.bf16.msra.mxu0 0
    %1871 = vmatpush.bf16.msra.mxu0 0
    %1872 = vmatpush.bf16.msra.mxu0 %v1313
    %1873 = vmatmul.bf16.gmra.mxu0 %v1512
    %v1874 = vpop.f32.mrf.mxu0
    %v1875 = vadd.f32 %v1862, %v1874
    %v1876 = vpop.f32.mrf.mxu0
    %1877 = vdwg.mxu0
    %v1878 = vmax.f32 %v1602, 0.0
    %v1879 = vmax.f32 %v1693, 0.0
    %v1880 = vmax.f32 %v1784, 0.0
    %v1881 = vmax.f32 %v1875, 0.0
    %v1882 = vpack.c.bf16 %v1878, %v1878
    %v1883 = vpack.c.bf16 %v1879, %v1879
    %v1884 = vpack.c.bf16 %v1880, %v1880
    %v1885 = vpack.c.bf16 %v1881, %v1881
    %v1887 = vperm.slane %v441, 0
    %v1888 = vperm.slane %v441, 1
    %v1889 = vperm.slane %v441, 2
    %v1890 = vperm.slane %v441, 3
    %v2023 = vunpack.c.l.b16 %v313
    %v2024 = vunpack.c.h.b16 %v313
    %v2025 = vunpack.c.l.b16 %v314
    %v2026 = vunpack.c.h.b16 %v314
    %v2027 = vunpack.c.l.b16 %v315
    %v2028 = vunpack.c.h.b16 %v315
    %v2029 = vunpack.c.l.b16 %v316
    %v2030 = vunpack.c.h.b16 %v316
    %v2031 = vunpack.c.l.b16 %v317
    %v2032 = vunpack.c.h.b16 %v317
    %v2033 = vunpack.c.l.b16 %v318
    %v2034 = vunpack.c.h.b16 %v318
    %v2035 = vunpack.c.l.b16 %v319
    %v2036 = vunpack.c.h.b16 %v319
    %v2037 = vunpack.c.l.b16 %v320
    %v2038 = vunpack.c.h.b16 %v320
    %v2039 = vunpack.c.l.b16 %v321
    %v2040 = vunpack.c.h.b16 %v321
    %v2041 = vunpack.c.l.b16 %v322
    %v2042 = vunpack.c.h.b16 %v322
    %v2043 = vunpack.c.l.b16 %v323
    %v2044 = vunpack.c.h.b16 %v323
    %v2045 = vunpack.c.l.b16 %v324
    %v2046 = vunpack.c.h.b16 %v324
    %v2047 = vunpack.c.l.b16 %v325
    %v2048 = vunpack.c.h.b16 %v325
    %v2049 = vunpack.c.l.b16 %v326
    %v2050 = vunpack.c.h.b16 %v326
    %v2051 = vunpack.c.l.b16 %v327
    %v2052 = vunpack.c.h.b16 %v327
    %v2053 = vunpack.c.l.b16 %v328
    %v2054 = vunpack.c.h.b16 %v328
    %v2055 = vunpack.c.l.b16 %v329
    %v2056 = vunpack.c.h.b16 %v329
    %v2057 = vunpack.c.l.b16 %v330
    %v2058 = vunpack.c.h.b16 %v330
    %v2059 = vunpack.c.l.b16 %v331
    %v2060 = vunpack.c.h.b16 %v331
    %v2061 = vunpack.c.l.b16 %v332
    %v2062 = vunpack.c.h.b16 %v332
    %v2063 = vunpack.c.l.b16 %v333
    %v2064 = vunpack.c.h.b16 %v333
    %v2065 = vunpack.c.l.b16 %v334
    %v2066 = vunpack.c.h.b16 %v334
    %v2067 = vunpack.c.l.b16 %v335
    %v2068 = vunpack.c.h.b16 %v335
    %v2069 = vunpack.c.l.b16 %v336
    %v2070 = vunpack.c.h.b16 %v336
    %v2071 = vunpack.c.l.b16 %v337
    %v2072 = vunpack.c.h.b16 %v337
    %v2073 = vunpack.c.l.b16 %v338
    %v2074 = vunpack.c.h.b16 %v338
    %v2075 = vunpack.c.l.b16 %v339
    %v2076 = vunpack.c.h.b16 %v339
    %v2077 = vunpack.c.l.b16 %v340
    %v2078 = vunpack.c.h.b16 %v340
    %v2079 = vunpack.c.l.b16 %v341
    %v2080 = vunpack.c.h.b16 %v341
    %v2081 = vunpack.c.l.b16 %v342
    %v2082 = vunpack.c.h.b16 %v342
    %v2083 = vunpack.c.l.b16 %v343
    %v2084 = vunpack.c.h.b16 %v343
    %v2085 = vunpack.c.l.b16 %v344
    %v2086 = vunpack.c.h.b16 %v344
    %v2087 = vunpack.c.l.b16 %v345
    %v2088 = vunpack.c.h.b16 %v345
    %v2089 = vunpack.c.l.b16 %v346
    %v2090 = vunpack.c.h.b16 %v346
    %v2091 = vunpack.c.l.b16 %v347
    %v2092 = vunpack.c.h.b16 %v347
    %v2093 = vunpack.c.l.b16 %v348
    %v2094 = vunpack.c.h.b16 %v348
    %v2095 = vunpack.c.l.b16 %v349
    %v2096 = vunpack.c.h.b16 %v349
    %v2097 = vunpack.c.l.b16 %v350
    %v2098 = vunpack.c.h.b16 %v350
    %v2099 = vunpack.c.l.b16 %v351
    %v2100 = vunpack.c.h.b16 %v351
    %v2101 = vunpack.c.l.b16 %v352
    %v2102 = vunpack.c.h.b16 %v352
    %v2103 = vunpack.c.l.b16 %v353
    %v2104 = vunpack.c.h.b16 %v353
    %v2105 = vunpack.c.l.b16 %v354
    %v2106 = vunpack.c.h.b16 %v354
    %v2107 = vunpack.c.l.b16 %v355
    %v2108 = vunpack.c.h.b16 %v355
    %v2109 = vunpack.c.l.b16 %v356
    %v2110 = vunpack.c.h.b16 %v356
    %v2111 = vunpack.c.l.b16 %v357
    %v2112 = vunpack.c.h.b16 %v357
    %v2113 = vunpack.c.l.b16 %v358
    %v2114 = vunpack.c.h.b16 %v358
    %v2115 = vunpack.c.l.b16 %v359
    %v2116 = vunpack.c.h.b16 %v359
    %v2117 = vunpack.c.l.b16 %v360
    %v2118 = vunpack.c.h.b16 %v360
    %v2119 = vunpack.c.l.b16 %v361
    %v2120 = vunpack.c.h.b16 %v361
    %v2121 = vunpack.c.l.b16 %v362
    %v2122 = vunpack.c.h.b16 %v362
    %v2123 = vunpack.c.l.b16 %v363
    %v2124 = vunpack.c.h.b16 %v363
    %v2125 = vunpack.c.l.b16 %v364
    %v2126 = vunpack.c.h.b16 %v364
    %v2127 = vunpack.c.l.b16 %v365
    %v2128 = vunpack.c.h.b16 %v365
    %v2129 = vunpack.c.l.b16 %v366
    %v2130 = vunpack.c.h.b16 %v366
    %v2131 = vunpack.c.l.b16 %v367
    %v2132 = vunpack.c.h.b16 %v367
    %v2133 = vunpack.c.l.b16 %v368
    %v2134 = vunpack.c.h.b16 %v368
    %v2135 = vunpack.c.l.b16 %v369
    %v2136 = vunpack.c.h.b16 %v369
    %v2137 = vunpack.c.l.b16 %v370
    %v2138 = vunpack.c.h.b16 %v370
    %v2139 = vunpack.c.l.b16 %v371
    %v2140 = vunpack.c.h.b16 %v371
    %v2141 = vunpack.c.l.b16 %v372
    %v2142 = vunpack.c.h.b16 %v372
    %v2143 = vunpack.c.l.b16 %v373
    %v2144 = vunpack.c.h.b16 %v373
    %v2145 = vunpack.c.l.b16 %v374
    %v2146 = vunpack.c.h.b16 %v374
    %v2147 = vunpack.c.l.b16 %v375
    %v2148 = vunpack.c.h.b16 %v375
    %v2149 = vunpack.c.l.b16 %v376
    %v2150 = vunpack.c.h.b16 %v376
    %v2151 = vunpack.c.l.b16 %v377
    %v2152 = vunpack.c.h.b16 %v377
    %v2153 = vunpack.c.l.b16 %v378
    %v2154 = vunpack.c.h.b16 %v378
    %v2155 = vunpack.c.l.b16 %v379
    %v2156 = vunpack.c.h.b16 %v379
    %v2157 = vunpack.c.l.b16 %v380
    %v2158 = vunpack.c.h.b16 %v380
    %v2159 = vunpack.c.l.b16 %v381
    %v2160 = vunpack.c.h.b16 %v381
    %v2161 = vunpack.c.l.b16 %v382
    %v2162 = vunpack.c.h.b16 %v382
    %v2163 = vunpack.c.l.b16 %v383
    %v2164 = vunpack.c.h.b16 %v383
    %v2165 = vunpack.c.l.b16 %v384
    %v2166 = vunpack.c.h.b16 %v384
    %v2167 = vunpack.c.l.b16 %v385
    %v2168 = vunpack.c.h.b16 %v385
    %v2169 = vunpack.c.l.b16 %v386
    %v2170 = vunpack.c.h.b16 %v386
    %v2171 = vunpack.c.l.b16 %v387
    %v2172 = vunpack.c.h.b16 %v387
    %v2173 = vunpack.c.l.b16 %v388
    %v2174 = vunpack.c.h.b16 %v388
    %v2175 = vunpack.c.l.b16 %v389
    %v2176 = vunpack.c.h.b16 %v389
    %v2177 = vunpack.c.l.b16 %v390
    %v2178 = vunpack.c.h.b16 %v390
    %v2179 = vunpack.c.l.b16 %v391
    %v2180 = vunpack.c.h.b16 %v391
    %v2181 = vunpack.c.l.b16 %v392
    %v2182 = vunpack.c.h.b16 %v392
    %v2183 = vunpack.c.l.b16 %v393
    %v2184 = vunpack.c.h.b16 %v393
    %v2185 = vunpack.c.l.b16 %v394
    %v2186 = vunpack.c.h.b16 %v394
    %v2187 = vunpack.c.l.b16 %v395
    %v2188 = vunpack.c.h.b16 %v395
    %v2189 = vunpack.c.l.b16 %v396
    %v2190 = vunpack.c.h.b16 %v396
    %v2191 = vunpack.c.l.b16 %v397
    %v2192 = vunpack.c.h.b16 %v397
    %v2193 = vunpack.c.l.b16 %v398
    %v2194 = vunpack.c.h.b16 %v398
    %v2195 = vunpack.c.l.b16 %v399
    %v2196 = vunpack.c.h.b16 %v399
    %v2197 = vunpack.c.l.b16 %v400
    %v2198 = vunpack.c.h.b16 %v400
    %v2199 = vunpack.c.l.b16 %v401
    %v2200 = vunpack.c.h.b16 %v401
    %v2201 = vunpack.c.l.b16 %v402
    %v2202 = vunpack.c.h.b16 %v402
    %v2203 = vunpack.c.l.b16 %v403
    %v2204 = vunpack.c.h.b16 %v403
    %v2205 = vunpack.c.l.b16 %v404
    %v2206 = vunpack.c.h.b16 %v404
    %v2207 = vunpack.c.l.b16 %v405
    %v2208 = vunpack.c.h.b16 %v405
    %v2209 = vunpack.c.l.b16 %v406
    %v2210 = vunpack.c.h.b16 %v406
    %v2211 = vunpack.c.l.b16 %v407
    %v2212 = vunpack.c.h.b16 %v407
    %v2213 = vunpack.c.l.b16 %v408
    %v2214 = vunpack.c.h.b16 %v408
    %v2215 = vunpack.c.l.b16 %v409
    %v2216 = vunpack.c.h.b16 %v409
    %v2217 = vunpack.c.l.b16 %v410
    %v2218 = vunpack.c.h.b16 %v410
    %v2219 = vunpack.c.l.b16 %v411
    %v2220 = vunpack.c.h.b16 %v411
    %v2221 = vunpack.c.l.b16 %v412
    %v2222 = vunpack.c.h.b16 %v412
    %v2223 = vunpack.c.l.b16 %v413
    %v2224 = vunpack.c.h.b16 %v413
    %v2225 = vunpack.c.l.b16 %v414
    %v2226 = vunpack.c.h.b16 %v414
    %v2227 = vunpack.c.l.b16 %v415
    %v2228 = vunpack.c.h.b16 %v415
    %v2229 = vunpack.c.l.b16 %v416
    %v2230 = vunpack.c.h.b16 %v416
    %v2231 = vunpack.c.l.b16 %v417
    %v2232 = vunpack.c.h.b16 %v417
    %v2233 = vunpack.c.l.b16 %v418
    %v2234 = vunpack.c.h.b16 %v418
    %v2235 = vunpack.c.l.b16 %v419
    %v2236 = vunpack.c.h.b16 %v419
    %v2237 = vunpack.c.l.b16 %v420
    %v2238 = vunpack.c.h.b16 %v420
    %v2239 = vunpack.c.l.b16 %v421
    %v2240 = vunpack.c.h.b16 %v421
    %v2241 = vunpack.c.l.b16 %v422
    %v2242 = vunpack.c.h.b16 %v422
    %v2243 = vunpack.c.l.b16 %v423
    %v2244 = vunpack.c.h.b16 %v423
    %v2245 = vunpack.c.l.b16 %v424
    %v2246 = vunpack.c.h.b16 %v424
    %v2247 = vunpack.c.l.b16 %v425
    %v2248 = vunpack.c.h.b16 %v425
    %v2249 = vunpack.c.l.b16 %v426
    %v2250 = vunpack.c.h.b16 %v426
    %v2251 = vunpack.c.l.b16 %v427
    %v2252 = vunpack.c.h.b16 %v427
    %v2253 = vunpack.c.l.b16 %v428
    %v2254 = vunpack.c.h.b16 %v428
    %v2255 = vunpack.c.l.b16 %v429
    %v2256 = vunpack.c.h.b16 %v429
    %v2257 = vunpack.c.l.b16 %v430
    %v2258 = vunpack.c.h.b16 %v430
    %v2259 = vunpack.c.l.b16 %v431
    %v2260 = vunpack.c.h.b16 %v431
    %v2261 = vunpack.c.l.b16 %v432
    %v2262 = vunpack.c.h.b16 %v432
    %v2263 = vunpack.c.l.b16 %v433
    %v2264 = vunpack.c.h.b16 %v433
    %v2265 = vunpack.c.l.b16 %v434
    %v2266 = vunpack.c.h.b16 %v434
    %v2267 = vunpack.c.l.b16 %v435
    %v2268 = vunpack.c.h.b16 %v435
    %v2269 = vunpack.c.l.b16 %v436
    %v2270 = vunpack.c.h.b16 %v436
    %v2271 = vunpack.c.l.b16 %v437
    %v2272 = vunpack.c.h.b16 %v437
    %v2273 = vunpack.c.l.b16 %v438
    %v2274 = vunpack.c.h.b16 %v438
    %v2275 = vunpack.c.l.b16 %v439
    %v2276 = vunpack.c.h.b16 %v439
    %v2277 = vunpack.c.l.b16 %v440
    %v2278 = vunpack.c.h.b16 %v440
    %v2279 = vpack.c.b16 %v2027, %v2023
    %v2280 = vpack.c.b16 %v2028, %v2024
    %v2281 = vpack.c.b16 %v2029, %v2025
    %v2282 = vpack.c.b16 %v2030, %v2026
    %v2283 = vpack.c.b16 %v2035, %v2031
    %v2284 = vpack.c.b16 %v2036, %v2032
    %v2285 = vpack.c.b16 %v2037, %v2033
    %v2286 = vpack.c.b16 %v2038, %v2034
    %v2287 = vpack.c.b16 %v2043, %v2039
    %v2288 = vpack.c.b16 %v2044, %v2040
    %v2289 = vpack.c.b16 %v2045, %v2041
    %v2290 = vpack.c.b16 %v2046, %v2042
    %v2291 = vpack.c.b16 %v2051, %v2047
    %v2292 = vpack.c.b16 %v2052, %v2048
    %v2293 = vpack.c.b16 %v2053, %v2049
    %v2294 = vpack.c.b16 %v2054, %v2050
    %v2295 = vpack.c.b16 %v2059, %v2055
    %v2296 = vpack.c.b16 %v2060, %v2056
    %v2297 = vpack.c.b16 %v2061, %v2057
    %v2298 = vpack.c.b16 %v2062, %v2058
    %v2299 = vpack.c.b16 %v2067, %v2063
    %v2300 = vpack.c.b16 %v2068, %v2064
    %v2301 = vpack.c.b16 %v2069, %v2065
    %v2302 = vpack.c.b16 %v2070, %v2066
    %v2303 = vpack.c.b16 %v2075, %v2071
    %v2304 = vpack.c.b16 %v2076, %v2072
    %v2305 = vpack.c.b16 %v2077, %v2073
    %v2306 = vpack.c.b16 %v2078, %v2074
    %v2307 = vpack.c.b16 %v2083, %v2079
    %v2308 = vpack.c.b16 %v2084, %v2080
    %v2309 = vpack.c.b16 %v2085, %v2081
    %v2310 = vpack.c.b16 %v2086, %v2082
    %v2311 = vpack.c.b16 %v2091, %v2087
    %v2312 = vpack.c.b16 %v2092, %v2088
    %v2313 = vpack.c.b16 %v2093, %v2089
    %v2314 = vpack.c.b16 %v2094, %v2090
    %v2315 = vpack.c.b16 %v2099, %v2095
    %v2316 = vpack.c.b16 %v2100, %v2096
    %v2317 = vpack.c.b16 %v2101, %v2097
    %v2318 = vpack.c.b16 %v2102, %v2098
    %v2319 = vpack.c.b16 %v2107, %v2103
    %v2320 = vpack.c.b16 %v2108, %v2104
    %v2321 = vpack.c.b16 %v2109, %v2105
    %v2322 = vpack.c.b16 %v2110, %v2106
    %v2323 = vpack.c.b16 %v2115, %v2111
    %v2324 = vpack.c.b16 %v2116, %v2112
    %v2325 = vpack.c.b16 %v2117, %v2113
    %v2326 = vpack.c.b16 %v2118, %v2114
    %v2327 = vpack.c.b16 %v2123, %v2119
    %v2328 = vpack.c.b16 %v2124, %v2120
    %v2329 = vpack.c.b16 %v2125, %v2121
    %v2330 = vpack.c.b16 %v2126, %v2122
    %v2331 = vpack.c.b16 %v2131, %v2127
    %v2332 = vpack.c.b16 %v2132, %v2128
    %v2333 = vpack.c.b16 %v2133, %v2129
    %v2334 = vpack.c.b16 %v2134, %v2130
    %v2335 = vpack.c.b16 %v2139, %v2135
    %v2336 = vpack.c.b16 %v2140, %v2136
    %v2337 = vpack.c.b16 %v2141, %v2137
    %v2338 = vpack.c.b16 %v2142, %v2138
    %v2339 = vpack.c.b16 %v2147, %v2143
    %v2340 = vpack.c.b16 %v2148, %v2144
    %v2341 = vpack.c.b16 %v2149, %v2145
    %v2342 = vpack.c.b16 %v2150, %v2146
    %v2343 = vpack.c.b16 %v2155, %v2151
    %v2344 = vpack.c.b16 %v2156, %v2152
    %v2345 = vpack.c.b16 %v2157, %v2153
    %v2346 = vpack.c.b16 %v2158, %v2154
    %v2347 = vpack.c.b16 %v2163, %v2159
    %v2348 = vpack.c.b16 %v2164, %v2160
    %v2349 = vpack.c.b16 %v2165, %v2161
    %v2350 = vpack.c.b16 %v2166, %v2162
    %v2351 = vpack.c.b16 %v2171, %v2167
    %v2352 = vpack.c.b16 %v2172, %v2168
    %v2353 = vpack.c.b16 %v2173, %v2169
    %v2354 = vpack.c.b16 %v2174, %v2170
    %v2355 = vpack.c.b16 %v2179, %v2175
    %v2356 = vpack.c.b16 %v2180, %v2176
    %v2357 = vpack.c.b16 %v2181, %v2177
    %v2358 = vpack.c.b16 %v2182, %v2178
    %v2359 = vpack.c.b16 %v2187, %v2183
    %v2360 = vpack.c.b16 %v2188, %v2184
    %v2361 = vpack.c.b16 %v2189, %v2185
    %v2362 = vpack.c.b16 %v2190, %v2186
    %v2363 = vpack.c.b16 %v2195, %v2191
    %v2364 = vpack.c.b16 %v2196, %v2192
    %v2365 = vpack.c.b16 %v2197, %v2193
    %v2366 = vpack.c.b16 %v2198, %v2194
    %v2367 = vpack.c.b16 %v2203, %v2199
    %v2368 = vpack.c.b16 %v2204, %v2200
    %v2369 = vpack.c.b16 %v2205, %v2201
    %v2370 = vpack.c.b16 %v2206, %v2202
    %v2371 = vpack.c.b16 %v2211, %v2207
    %v2372 = vpack.c.b16 %v2212, %v2208
    %v2373 = vpack.c.b16 %v2213, %v2209
    %v2374 = vpack.c.b16 %v2214, %v2210
    %v2375 = vpack.c.b16 %v2219, %v2215
    %v2376 = vpack.c.b16 %v2220, %v2216
    %v2377 = vpack.c.b16 %v2221, %v2217
    %v2378 = vpack.c.b16 %v2222, %v2218
    %v2379 = vpack.c.b16 %v2227, %v2223
    %v2380 = vpack.c.b16 %v2228, %v2224
    %v2381 = vpack.c.b16 %v2229, %v2225
    %v2382 = vpack.c.b16 %v2230, %v2226
    %v2383 = vpack.c.b16 %v2235, %v2231
    %v2384 = vpack.c.b16 %v2236, %v2232
    %v2385 = vpack.c.b16 %v2237, %v2233
    %v2386 = vpack.c.b16 %v2238, %v2234
    %v2387 = vpack.c.b16 %v2243, %v2239
    %v2388 = vpack.c.b16 %v2244, %v2240
    %v2389 = vpack.c.b16 %v2245, %v2241
    %v2390 = vpack.c.b16 %v2246, %v2242
    %v2391 = vpack.c.b16 %v2251, %v2247
    %v2392 = vpack.c.b16 %v2252, %v2248
    %v2393 = vpack.c.b16 %v2253, %v2249
    %v2394 = vpack.c.b16 %v2254, %v2250
    %v2395 = vpack.c.b16 %v2259, %v2255
    %v2396 = vpack.c.b16 %v2260, %v2256
    %v2397 = vpack.c.b16 %v2261, %v2257
    %v2398 = vpack.c.b16 %v2262, %v2258
    %v2399 = vpack.c.b16 %v2267, %v2263
    %v2400 = vpack.c.b16 %v2268, %v2264
    %v2401 = vpack.c.b16 %v2269, %v2265
    %v2402 = vpack.c.b16 %v2270, %v2266
    %v2403 = vpack.c.b16 %v2275, %v2271
    %v2404 = vpack.c.b16 %v2276, %v2272
    %v2405 = vpack.c.b16 %v2277, %v2273
    %v2406 = vpack.c.b16 %v2278, %v2274
    %2535 = vmatpush.bf16.msra.mxu0 %v2307
    %2536 = vmatpush.bf16.msra.mxu0 %v2303
    %2537 = vmatpush.bf16.msra.mxu0 %v2299
    %2538 = vmatpush.bf16.msra.mxu0 %v2295
    %2539 = vmatpush.bf16.msra.mxu0 %v2291
    %2540 = vmatpush.bf16.msra.mxu0 %v2287
    %2541 = vmatpush.bf16.msra.mxu0 %v2283
    %2542 = vmatpush.bf16.msra.mxu0 %v2279
    %2543 = vmatmul.bf16.gmra.mxu0 %v1882
    %v2544 = vpop.f32.mrf.mxu0
    %v2545 = vadd.f32 %v1887, %v2544
    %v2546 = vpop.f32.mrf.mxu0
    %2547 = vdwg.mxu0
    %2548 = vmatpush.bf16.msra.mxu0 %v2339
    %2549 = vmatpush.bf16.msra.mxu0 %v2335
    %2550 = vmatpush.bf16.msra.mxu0 %v2331
    %2551 = vmatpush.bf16.msra.mxu0 %v2327
    %2552 = vmatpush.bf16.msra.mxu0 %v2323
    %2553 = vmatpush.bf16.msra.mxu0 %v2319
    %2554 = vmatpush.bf16.msra.mxu0 %v2315
    %2555 = vmatpush.bf16.msra.mxu0 %v2311
    %2556 = vmatmul.bf16.gmra.mxu0 %v1883
    %v2557 = vpop.f32.mrf.mxu0
    %v2558 = vadd.f32 %v2545, %v2557
    %v2559 = vpop.f32.mrf.mxu0
    %2560 = vdwg.mxu0
    %2561 = vmatpush.bf16.msra.mxu0 %v2371
    %2562 = vmatpush.bf16.msra.mxu0 %v2367
    %2563 = vmatpush.bf16.msra.mxu0 %v2363
    %2564 = vmatpush.bf16.msra.mxu0 %v2359
    %2565 = vmatpush.bf16.msra.mxu0 %v2355
    %2566 = vmatpush.bf16.msra.mxu0 %v2351
    %2567 = vmatpush.bf16.msra.mxu0 %v2347
    %2568 = vmatpush.bf16.msra.mxu0 %v2343
    %2569 = vmatmul.bf16.gmra.mxu0 %v1884
    %v2570 = vpop.f32.mrf.mxu0
    %v2571 = vadd.f32 %v2558, %v2570
    %v2572 = vpop.f32.mrf.mxu0
    %2573 = vdwg.mxu0
    %2574 = vmatpush.bf16.msra.mxu0 %v2403
    %2575 = vmatpush.bf16.msra.mxu0 %v2399
    %2576 = vmatpush.bf16.msra.mxu0 %v2395
    %2577 = vmatpush.bf16.msra.mxu0 %v2391
    %2578 = vmatpush.bf16.msra.mxu0 %v2387
    %2579 = vmatpush.bf16.msra.mxu0 %v2383
    %2580 = vmatpush.bf16.msra.mxu0 %v2379
    %2581 = vmatpush.bf16.msra.mxu0 %v2375
    %2582 = vmatmul.bf16.gmra.mxu0 %v1885
    %v2583 = vpop.f32.mrf.mxu0
    %v2584 = vadd.f32 %v2571, %v2583
    %v2585 = vpop.f32.mrf.mxu0
    %2586 = vdwg.mxu0
    %2587 = vmatpush.bf16.msra.mxu0 %v2308
    %2588 = vmatpush.bf16.msra.mxu0 %v2304
    %2589 = vmatpush.bf16.msra.mxu0 %v2300
    %2590 = vmatpush.bf16.msra.mxu0 %v2296
    %2591 = vmatpush.bf16.msra.mxu0 %v2292
    %2592 = vmatpush.bf16.msra.mxu0 %v2288
    %2593 = vmatpush.bf16.msra.mxu0 %v2284
    %2594 = vmatpush.bf16.msra.mxu0 %v2280
    %2595 = vmatmul.bf16.gmra.mxu0 %v1882
    %v2596 = vpop.f32.mrf.mxu0
    %v2597 = vadd.f32 %v1888, %v2596
    %v2598 = vpop.f32.mrf.mxu0
    %2599 = vdwg.mxu0
    %2600 = vmatpush.bf16.msra.mxu0 %v2340
    %2601 = vmatpush.bf16.msra.mxu0 %v2336
    %2602 = vmatpush.bf16.msra.mxu0 %v2332
    %2603 = vmatpush.bf16.msra.mxu0 %v2328
    %2604 = vmatpush.bf16.msra.mxu0 %v2324
    %2605 = vmatpush.bf16.msra.mxu0 %v2320
    %2606 = vmatpush.bf16.msra.mxu0 %v2316
    %2607 = vmatpush.bf16.msra.mxu0 %v2312
    %2608 = vmatmul.bf16.gmra.mxu0 %v1883
    %v2609 = vpop.f32.mrf.mxu0
    %v2610 = vadd.f32 %v2597, %v2609
    %v2611 = vpop.f32.mrf.mxu0
    %2612 = vdwg.mxu0
    %2613 = vmatpush.bf16.msra.mxu0 %v2372
    %2614 = vmatpush.bf16.msra.mxu0 %v2368
    %2615 = vmatpush.bf16.msra.mxu0 %v2364
    %2616 = vmatpush.bf16.msra.mxu0 %v2360
    %2617 = vmatpush.bf16.msra.mxu0 %v2356
    %2618 = vmatpush.bf16.msra.mxu0 %v2352
    %2619 = vmatpush.bf16.msra.mxu0 %v2348
    %2620 = vmatpush.bf16.msra.mxu0 %v2344
    %2621 = vmatmul.bf16.gmra.mxu0 %v1884
    %v2622 = vpop.f32.mrf.mxu0
    %v2623 = vadd.f32 %v2610, %v2622
    %v2624 = vpop.f32.mrf.mxu0
    %2625 = vdwg.mxu0
    %2626 = vmatpush.bf16.msra.mxu0 %v2404
    %2627 = vmatpush.bf16.msra.mxu0 %v2400
    %2628 = vmatpush.bf16.msra.mxu0 %v2396
    %2629 = vmatpush.bf16.msra.mxu0 %v2392
    %2630 = vmatpush.bf16.msra.mxu0 %v2388
    %2631 = vmatpush.bf16.msra.mxu0 %v2384
    %2632 = vmatpush.bf16.msra.mxu0 %v2380
    %2633 = vmatpush.bf16.msra.mxu0 %v2376
    %2634 = vmatmul.bf16.gmra.mxu0 %v1885
    %v2635 = vpop.f32.mrf.mxu0
    %v2636 = vadd.f32 %v2623, %v2635
    %v2637 = vpop.f32.mrf.mxu0
    %2638 = vdwg.mxu0
    %2639 = vmatpush.bf16.msra.mxu0 %v2309
    %2640 = vmatpush.bf16.msra.mxu0 %v2305
    %2641 = vmatpush.bf16.msra.mxu0 %v2301
    %2642 = vmatpush.bf16.msra.mxu0 %v2297
    %2643 = vmatpush.bf16.msra.mxu0 %v2293
    %2644 = vmatpush.bf16.msra.mxu0 %v2289
    %2645 = vmatpush.bf16.msra.mxu0 %v2285
    %2646 = vmatpush.bf16.msra.mxu0 %v2281
    %2647 = vmatmul.bf16.gmra.mxu0 %v1882
    %v2648 = vpop.f32.mrf.mxu0
    %v2649 = vadd.f32 %v1889, %v2648
    %v2650 = vpop.f32.mrf.mxu0
    %2651 = vdwg.mxu0
    %2652 = vmatpush.bf16.msra.mxu0 %v2341
    %2653 = vmatpush.bf16.msra.mxu0 %v2337
    %2654 = vmatpush.bf16.msra.mxu0 %v2333
    %2655 = vmatpush.bf16.msra.mxu0 %v2329
    %2656 = vmatpush.bf16.msra.mxu0 %v2325
    %2657 = vmatpush.bf16.msra.mxu0 %v2321
    %2658 = vmatpush.bf16.msra.mxu0 %v2317
    %2659 = vmatpush.bf16.msra.mxu0 %v2313
    %2660 = vmatmul.bf16.gmra.mxu0 %v1883
    %v2661 = vpop.f32.mrf.mxu0
    %v2662 = vadd.f32 %v2649, %v2661
    %v2663 = vpop.f32.mrf.mxu0
    %2664 = vdwg.mxu0
    %2665 = vmatpush.bf16.msra.mxu0 %v2373
    %2666 = vmatpush.bf16.msra.mxu0 %v2369
    %2667 = vmatpush.bf16.msra.mxu0 %v2365
    %2668 = vmatpush.bf16.msra.mxu0 %v2361
    %2669 = vmatpush.bf16.msra.mxu0 %v2357
    %2670 = vmatpush.bf16.msra.mxu0 %v2353
    %2671 = vmatpush.bf16.msra.mxu0 %v2349
    %2672 = vmatpush.bf16.msra.mxu0 %v2345
    %2673 = vmatmul.bf16.gmra.mxu0 %v1884
    %v2674 = vpop.f32.mrf.mxu0
    %v2675 = vadd.f32 %v2662, %v2674
    %v2676 = vpop.f32.mrf.mxu0
    %2677 = vdwg.mxu0
    %2678 = vmatpush.bf16.msra.mxu0 %v2405
    %2679 = vmatpush.bf16.msra.mxu0 %v2401
    %2680 = vmatpush.bf16.msra.mxu0 %v2397
    %2681 = vmatpush.bf16.msra.mxu0 %v2393
    %2682 = vmatpush.bf16.msra.mxu0 %v2389
    %2683 = vmatpush.bf16.msra.mxu0 %v2385
    %2684 = vmatpush.bf16.msra.mxu0 %v2381
    %2685 = vmatpush.bf16.msra.mxu0 %v2377
    %2686 = vmatmul.bf16.gmra.mxu0 %v1885
    %v2687 = vpop.f32.mrf.mxu0
    %v2688 = vadd.f32 %v2675, %v2687
    %v2689 = vpop.f32.mrf.mxu0
    %2690 = vdwg.mxu0
    %2691 = vmatpush.bf16.msra.mxu0 %v2310
    %2692 = vmatpush.bf16.msra.mxu0 %v2306
    %2693 = vmatpush.bf16.msra.mxu0 %v2302
    %2694 = vmatpush.bf16.msra.mxu0 %v2298
    %2695 = vmatpush.bf16.msra.mxu0 %v2294
    %2696 = vmatpush.bf16.msra.mxu0 %v2290
    %2697 = vmatpush.bf16.msra.mxu0 %v2286
    %2698 = vmatpush.bf16.msra.mxu0 %v2282
    %2699 = vmatmul.bf16.gmra.mxu0 %v1882
    %v2700 = vpop.f32.mrf.mxu0
    %v2701 = vadd.f32 %v1890, %v2700
    %v2702 = vpop.f32.mrf.mxu0
    %2703 = vdwg.mxu0
    %2704 = vmatpush.bf16.msra.mxu0 %v2342
    %2705 = vmatpush.bf16.msra.mxu0 %v2338
    %2706 = vmatpush.bf16.msra.mxu0 %v2334
    %2707 = vmatpush.bf16.msra.mxu0 %v2330
    %2708 = vmatpush.bf16.msra.mxu0 %v2326
    %2709 = vmatpush.bf16.msra.mxu0 %v2322
    %2710 = vmatpush.bf16.msra.mxu0 %v2318
    %2711 = vmatpush.bf16.msra.mxu0 %v2314
    %2712 = vmatmul.bf16.gmra.mxu0 %v1883
    %v2713 = vpop.f32.mrf.mxu0
    %v2714 = vadd.f32 %v2701, %v2713
    %v2715 = vpop.f32.mrf.mxu0
    %2716 = vdwg.mxu0
    %2717 = vmatpush.bf16.msra.mxu0 %v2374
    %2718 = vmatpush.bf16.msra.mxu0 %v2370
    %2719 = vmatpush.bf16.msra.mxu0 %v2366
    %2720 = vmatpush.bf16.msra.mxu0 %v2362
    %2721 = vmatpush.bf16.msra.mxu0 %v2358
    %2722 = vmatpush.bf16.msra.mxu0 %v2354
    %2723 = vmatpush.bf16.msra.mxu0 %v2350
    %2724 = vmatpush.bf16.msra.mxu0 %v2346
    %2725 = vmatmul.bf16.gmra.mxu0 %v1884
    %v2726 = vpop.f32.mrf.mxu0
    %v2727 = vadd.f32 %v2714, %v2726
    %v2728 = vpop.f32.mrf.mxu0
    %2729 = vdwg.mxu0
    %2730 = vmatpush.bf16.msra.mxu0 %v2406
    %2731 = vmatpush.bf16.msra.mxu0 %v2402
    %2732 = vmatpush.bf16.msra.mxu0 %v2398
    %2733 = vmatpush.bf16.msra.mxu0 %v2394
    %2734 = vmatpush.bf16.msra.mxu0 %v2390
    %2735 = vmatpush.bf16.msra.mxu0 %v2386
    %2736 = vmatpush.bf16.msra.mxu0 %v2382
    %2737 = vmatpush.bf16.msra.mxu0 %v2378
    %2738 = vmatmul.bf16.gmra.mxu0 %v1885
    %v2739 = vpop.f32.mrf.mxu0
    %v2740 = vadd.f32 %v2727, %v2739
    %v2741 = vpop.f32.mrf.mxu0
    %2742 = vdwg.mxu0
    %v2743 = vmax.f32 %v2584, 0.0
    %v2744 = vmax.f32 %v2636, 0.0
    %v2745 = vmax.f32 %v2688, 0.0
    %v2746 = vmax.f32 %v2740, 0.0
    %v2747 = vpack.c.bf16 %v2743, %v2743
    %v2748 = vpack.c.bf16 %v2744, %v2744
    %v2749 = vpack.c.bf16 %v2745, %v2745
    %v2750 = vpack.c.bf16 %v2746, %v2746
    %v2752 = vperm.slane %v506, 0
    %v2818 = vunpack.c.l.b16 %v442
    %v2819 = vunpack.c.l.b16 %v443
    %v2820 = vunpack.c.l.b16 %v444
    %v2821 = vunpack.c.l.b16 %v445
    %v2822 = vunpack.c.l.b16 %v446
    %v2823 = vunpack.c.l.b16 %v447
    %v2824 = vunpack.c.l.b16 %v448
    %v2825 = vunpack.c.l.b16 %v449
    %v2826 = vunpack.c.l.b16 %v450
    %v2827 = vunpack.c.l.b16 %v451
    %v2828 = vunpack.c.l.b16 %v452
    %v2829 = vunpack.c.l.b16 %v453
    %v2830 = vunpack.c.l.b16 %v454
    %v2831 = vunpack.c.l.b16 %v455
    %v2832 = vunpack.c.l.b16 %v456
    %v2833 = vunpack.c.l.b16 %v457
    %v2834 = vunpack.c.l.b16 %v458
    %v2835 = vunpack.c.l.b16 %v459
    %v2836 = vunpack.c.l.b16 %v460
    %v2837 = vunpack.c.l.b16 %v461
    %v2838 = vunpack.c.l.b16 %v462
    %v2839 = vunpack.c.l.b16 %v463
    %v2840 = vunpack.c.l.b16 %v464
    %v2841 = vunpack.c.l.b16 %v465
    %v2842 = vunpack.c.l.b16 %v466
    %v2843 = vunpack.c.l.b16 %v467
    %v2844 = vunpack.c.l.b16 %v468
    %v2845 = vunpack.c.l.b16 %v469
    %v2846 = vunpack.c.l.b16 %v470
    %v2847 = vunpack.c.l.b16 %v471
    %v2848 = vunpack.c.l.b16 %v472
    %v2849 = vunpack.c.l.b16 %v473
    %v2850 = vunpack.c.l.b16 %v474
    %v2851 = vunpack.c.l.b16 %v475
    %v2852 = vunpack.c.l.b16 %v476
    %v2853 = vunpack.c.l.b16 %v477
    %v2854 = vunpack.c.l.b16 %v478
    %v2855 = vunpack.c.l.b16 %v479
    %v2856 = vunpack.c.l.b16 %v480
    %v2857 = vunpack.c.l.b16 %v481
    %v2858 = vunpack.c.l.b16 %v482
    %v2859 = vunpack.c.l.b16 %v483
    %v2860 = vunpack.c.l.b16 %v484
    %v2861 = vunpack.c.l.b16 %v485
    %v2862 = vunpack.c.l.b16 %v486
    %v2863 = vunpack.c.l.b16 %v487
    %v2864 = vunpack.c.l.b16 %v488
    %v2865 = vunpack.c.l.b16 %v489
    %v2866 = vunpack.c.l.b16 %v490
    %v2867 = vunpack.c.l.b16 %v491
    %v2868 = vunpack.c.l.b16 %v492
    %v2869 = vunpack.c.l.b16 %v493
    %v2870 = vunpack.c.l.b16 %v494
    %v2871 = vunpack.c.l.b16 %v495
    %v2872 = vunpack.c.l.b16 %v496
    %v2873 = vunpack.c.l.b16 %v497
    %v2874 = vunpack.c.l.b16 %v498
    %v2875 = vunpack.c.l.b16 %v499
    %v2876 = vunpack.c.l.b16 %v500
    %v2877 = vunpack.c.l.b16 %v501
    %v2878 = vunpack.c.l.b16 %v502
    %v2879 = vunpack.c.l.b16 %v503
    %v2880 = vunpack.c.l.b16 %v504
    %v2881 = vunpack.c.l.b16 %v505
    %v2882 = vpack.c.b16 %v2819, %v2818
    %v2883 = vpack.c.b16 %v2821, %v2820
    %v2884 = vpack.c.b16 %v2823, %v2822
    %v2885 = vpack.c.b16 %v2825, %v2824
    %v2886 = vpack.c.b16 %v2827, %v2826
    %v2887 = vpack.c.b16 %v2829, %v2828
    %v2888 = vpack.c.b16 %v2831, %v2830
    %v2889 = vpack.c.b16 %v2833, %v2832
    %v2890 = vpack.c.b16 %v2835, %v2834
    %v2891 = vpack.c.b16 %v2837, %v2836
    %v2892 = vpack.c.b16 %v2839, %v2838
    %v2893 = vpack.c.b16 %v2841, %v2840
    %v2894 = vpack.c.b16 %v2843, %v2842
    %v2895 = vpack.c.b16 %v2845, %v2844
    %v2896 = vpack.c.b16 %v2847, %v2846
    %v2897 = vpack.c.b16 %v2849, %v2848
    %v2898 = vpack.c.b16 %v2851, %v2850
    %v2899 = vpack.c.b16 %v2853, %v2852
    %v2900 = vpack.c.b16 %v2855, %v2854
    %v2901 = vpack.c.b16 %v2857, %v2856
    %v2902 = vpack.c.b16 %v2859, %v2858
    %v2903 = vpack.c.b16 %v2861, %v2860
    %v2904 = vpack.c.b16 %v2863, %v2862
    %v2905 = vpack.c.b16 %v2865, %v2864
    %v2906 = vpack.c.b16 %v2867, %v2866
    %v2907 = vpack.c.b16 %v2869, %v2868
    %v2908 = vpack.c.b16 %v2871, %v2870
    %v2909 = vpack.c.b16 %v2873, %v2872
    %v2910 = vpack.c.b16 %v2875, %v2874
    %v2911 = vpack.c.b16 %v2877, %v2876
    %v2912 = vpack.c.b16 %v2879, %v2878
    %v2913 = vpack.c.b16 %v2881, %v2880
    %2946 = vmatpush.bf16.msra.mxu0 %v2889
    %2947 = vmatpush.bf16.msra.mxu0 %v2888
    %2948 = vmatpush.bf16.msra.mxu0 %v2887
    %2949 = vmatpush.bf16.msra.mxu0 %v2886
    %2950 = vmatpush.bf16.msra.mxu0 %v2885
    %2951 = vmatpush.bf16.msra.mxu0 %v2884
    %2952 = vmatpush.bf16.msra.mxu0 %v2883
    %2953 = vmatpush.bf16.msra.mxu0 %v2882
    %2954 = vmatmul.bf16.gmra.mxu0 %v2747
    %v2955 = vpop.f32.mrf.mxu0
    %v2956 = vadd.f32 %v2752, %v2955
    %v2957 = vpop.f32.mrf.mxu0
    %2958 = vdwg.mxu0
    %2959 = vmatpush.bf16.msra.mxu0 %v2897
    %2960 = vmatpush.bf16.msra.mxu0 %v2896
    %2961 = vmatpush.bf16.msra.mxu0 %v2895
    %2962 = vmatpush.bf16.msra.mxu0 %v2894
    %2963 = vmatpush.bf16.msra.mxu0 %v2893
    %2964 = vmatpush.bf16.msra.mxu0 %v2892
    %2965 = vmatpush.bf16.msra.mxu0 %v2891
    %2966 = vmatpush.bf16.msra.mxu0 %v2890
    %2967 = vmatmul.bf16.gmra.mxu0 %v2748
    %v2968 = vpop.f32.mrf.mxu0
    %v2969 = vadd.f32 %v2956, %v2968
    %v2970 = vpop.f32.mrf.mxu0
    %2971 = vdwg.mxu0
    %2972 = vmatpush.bf16.msra.mxu0 %v2905
    %2973 = vmatpush.bf16.msra.mxu0 %v2904
    %2974 = vmatpush.bf16.msra.mxu0 %v2903
    %2975 = vmatpush.bf16.msra.mxu0 %v2902
    %2976 = vmatpush.bf16.msra.mxu0 %v2901
    %2977 = vmatpush.bf16.msra.mxu0 %v2900
    %2978 = vmatpush.bf16.msra.mxu0 %v2899
    %2979 = vmatpush.bf16.msra.mxu0 %v2898
    %2980 = vmatmul.bf16.gmra.mxu0 %v2749
    %v2981 = vpop.f32.mrf.mxu0
    %v2982 = vadd.f32 %v2969, %v2981
    %v2983 = vpop.f32.mrf.mxu0
    %2984 = vdwg.mxu0
    %2985 = vmatpush.bf16.msra.mxu0 %v2913
    %2986 = vmatpush.bf16.msra.mxu0 %v2912
    %2987 = vmatpush.bf16.msra.mxu0 %v2911
    %2988 = vmatpush.bf16.msra.mxu0 %v2910
    %2989 = vmatpush.bf16.msra.mxu0 %v2909
    %2990 = vmatpush.bf16.msra.mxu0 %v2908
    %2991 = vmatpush.bf16.msra.mxu0 %v2907
    %2992 = vmatpush.bf16.msra.mxu0 %v2906
    %2993 = vmatmul.bf16.gmra.mxu0 %v2750
    %v2994 = vpop.f32.mrf.mxu0
    %v2995 = vadd.f32 %v2982, %v2994
    %v2996 = vpop.f32.mrf.mxu0
    %2997 = vdwg.mxu0
    %2998 = vst [vmem:[#allocation13] sm:$0xff] %v2995
    // Predicated region
    $region54: #{tpu_custom_call.1} parent=1 // pred_check
      _
    $region55: #{tpu_custom_call.1} parent=1 // pred_check_branch
      %3000 = sbr.rel (0) target = $region57
    $region56: #{tpu_custom_call.1} parent=1 // pred_region
      %3002 = vsyncadd [#allocation4], 0
      %s3004 = sshll.u32 [#allocation13], 4
      %s3005 = int_to_ptr.vmem [resolvable:$true] %s3004
      %s3006 = sshll.u32 %s7, 4
      %s3007 = int_to_ptr.hbm [resolvable:$true] %s3006
      %3009 = dma.vmem_to_hbm [thread:$0]  %s3005, 128, %s3007, [#allocation4]
    $region57: #{tpu_custom_call.1} parent=1 // pred_fallthru
      _
    // Predicated region
    $region58: #{tpu_custom_call.1} parent=1 // pred_check
      _
    $region59: #{tpu_custom_call.1} parent=1 // pred_check_branch
      %3011 = sbr.rel (0) target = $region61
    $region60: #{tpu_custom_call.1} parent=1 // pred_region
      %3013 = dma.done [#allocation4], 128
    $region61: #{tpu_custom_call.1} parent=1 // pred_fallthru
      _
    %3014 = vsyncpa [#allocation3], 1
    %3015 = vsyncpa [#allocation6], 1
    %3016 = vsyncpa [#allocation9], 1
    %3017 = vsyncpa [#allocation12], 1
    %3018 = vsyncpa [#allocation4], 1

</llo_original>
